<compile_context>
chip_gen: v7x
topology: tpu7x:2x2x1
jax: 0.10.0
libtpu: 0.0.40
codegen_flags: <defaults>
</compile_context>

<pallas_src>
import functools

import numpy as np
import jax
import jax.numpy as jnp
from jax.experimental import pallas as pl
from jax.experimental.pallas import tpu as pltpu


def _round_up(v, m):
    return ((v + m - 1) // m) * m


@functools.lru_cache(maxsize=None)
def _build_dft_operators(a, b, dtype):
    """Separate Re/Im rFFT2 / irFFT2 operators on the flattened (a*b) spatial axis.

    dtype: np.dtype of the MXU operands (cache key; constants reused across calls).

    Returns:
      f_r, f_i: (hwp, a*b)  Re / Im rows of the UNnormalized forward rDFT2
                            (X = f_r@x + i * f_i@x), rows hw..hwp zero-padded.
      g_r, g_i: (a*b, hwp)  inverse operator: y = g_r@Yr + g_i@Yi reproduces
                            irfft2 with the combined 'ortho'*'ortho' 1/(a*b)
                            normalization and Hermitian multiplicity folded in.
      hwp     : a*(b//2+1) rounded up to the packed sublane multiple of `dtype`.
    """
    w_half = b // 2 + 1
    hw = a * w_half
    # bf16 packs 16 rows per sublane group, f32 packs 8 -> keep boundaries aligned.
    pack = 8 * max(1, 4 // dtype.itemsize)
    hwp = _round_up(hw, pack)
    ab = a * b

    k = np.arange(a)
    m = np.arange(a)
    l = np.arange(w_half)
    n = np.arange(b)
    # Reduce the phase mod its period before multiplying by 2*pi (precision).
    km = np.outer(k, m) % a                       # (a, a)
    ln = np.outer(l, n) % b                       # (w_half, b)
    theta = 2.0 * np.pi * (km[:, None, :, None] / a + ln[None, :, None, :] / b)
    theta = theta.reshape(hw, ab)                 # row r = k*w_half + l, col s = m*b + n
    cos_t = np.cos(theta)
    sin_t = np.sin(theta)

    f_r = np.zeros((hwp, ab), np.float64)
    f_i = np.zeros((hwp, ab), np.float64)
    f_r[:hw] = cos_t                              # Re part of e^{-i theta}
    f_i[:hw] = -sin_t                             # Im part of e^{-i theta}

    # Hermitian multiplicity: 1 for DC (and Nyquist when b even), else 2.
    alpha = np.full(w_half, 2.0)
    alpha[0] = 1.0
    if b % 2 == 0:
        alpha[b // 2] = 1.0
    alpha_flat = np.tile(alpha, a)                # alpha at row r = k*w_half + l

    scale = 1.0 / float(a * b)                    # ortho fwd * ortho inv
    g_r = np.zeros((ab, hwp), np.float64)
    g_i = np.zeros((ab, hwp), np.float64)
    g_r[:, :hw] = (alpha_flat[None, :] * cos_t.T) * scale
    g_i[:, :hw] = -(alpha_flat[None, :] * sin_t.T) * scale

    to = lambda arr: jnp.asarray(arr, dtype=dtype)
    return to(f_r), to(f_i), to(g_r), to(g_i), hwp


def _global_filter_kernel(x_ref, wr_ref, wi_ref, fr_ref, fi_ref, gr_ref, gi_ref,
                          o_ref):
    """One (batch-tile, channel-tile) block: y = irfft2(rfft2(x) * W), 'ortho' norm.

    x_ref  : (Bb, a*b, Cb)  input in its native dtype, channels on lanes
    wr/wi  : (hwp, Cb)      f32 real / imag filter tile (rows hw..hwp zero)
    fr/fi  : (hwp, a*b)     forward rDFT2 operator (Re / Im), compute dtype
    gr/gi  : (a*b, hwp)     fused inverse rDFT2 operator (Re / Im), compute dtype
    o_ref  : (Bb, a*b, Cb)  output
    """
    cdt = fr_ref.dtype
    fr = fr_ref[...]
    fi = fi_ref[...]
    gr = gr_ref[...]
    gi = gi_ref[...]
    wr = wr_ref[...]
    wi = wi_ref[...]

    # Statically unrolled loop over the folded batch dim (Bb is small): the DFT
    # operators and filter tile stay resident, per-step grid overhead amortized.
    for i in range(x_ref.shape[0]):
        x = x_ref[i].astype(cdt)                                        # (ab, Cb)
        # Forward 2D real DFT: two MXU matmuls, K = a*b, N = Cb (lane-dense).
        xr = jnp.dot(fr, x, preferred_element_type=jnp.float32)         # (hwp, Cb)
        xi = jnp.dot(fi, x, preferred_element_type=jnp.float32)
        # Learned complex filter: elementwise in f32 on the VPU.
        yr = xr * wr - xi * wi
        yi = xr * wi + xi * wr
        # Inverse 2D real DFT: two f32-accumulated MXU matmuls (no concat).
        o = jnp.dot(gr, yr.astype(cdt), preferred_element_type=jnp.float32)
        o = o + jnp.dot(gi, yi.astype(cdt), preferred_element_type=jnp.float32)
        o_ref[i] = o.astype(o_ref.dtype)


def _pick_channel_tile(C):
    if C <= 512:
        return C
    # Prefer >= 256-wide tiles (MXU-native N on v6e/v7x); 128 is native on v5e.
    for cand in (512, 384, 256, 128):
        if C % cand == 0:
            return cand
    return C


def _pick_batch_tile(B, N, cb, in_bytes, out_bytes, max_tile=8,
                     vmem_budget=40 * 1024 * 1024):
    """Largest divisor of B (<= max_tile) whose double-buffered x+out block fits
    comfortably under the v7x scoped-VMEM budget, preferring to keep >= 2 batch
    blocks so the v7x 2-TC megacore split lands on the batch axis."""
    divs = [d for d in range(1, min(B, max_tile) + 1) if B % d == 0]
    fits = [d for d in divs
            if 2 * d * N * cb * (in_bytes + out_bytes) <= vmem_budget] or [1]
    good = [d for d in fits if B // d >= 2]
    return max(good) if good else max(fits)


def global_filter(x, complex_weight, a, b, *, compute_dtype=jnp.bfloat16,
                  out_dtype=jnp.float32, channel_tile=None, batch_tile=None):
    """Pallas implementation of GlobalFilter.forward.

    x             : (B, N, C) with N == a*b, any float dtype (DMA'd as-is, no
                    wrapper upcast; cast to compute_dtype inside the kernel).
    complex_weight: (a, b//2+1, C, 2) float32 (same shape as the torch Parameter).
    compute_dtype : MXU operand dtype (bf16 recommended on all chips, f32 is a
                    test-only configuration); accumulation & filter math are f32.
    out_dtype     : output dtype; f32 matches the torch module, bf16 halves the
                    output HBM writeback.
    """
    B, N, C = x.shape
    assert N == a * b, (N, a, b)
    w_half = b // 2 + 1
    assert complex_weight.shape == (a, w_half, C, 2), complex_weight.shape

    cdt = np.dtype(compute_dtype)
    f_r, f_i, g_r, g_i, hwp = _build_dft_operators(a, b, cdt)
    hw = a * w_half

    # Filter, channel-last, f32 (VPU math), zero-padded along freq axis to hwp.
    # Cheap; under jax.jit this folds/fuses into the surrounding model graph.
    wr = complex_weight[..., 0].reshape(hw, C).astype(jnp.float32)
    wi = complex_weight[..., 1].reshape(hw, C).astype(jnp.float32)
    if hwp > hw:
        wr = jnp.pad(wr, ((0, hwp - hw), (0, 0)))
        wi = jnp.pad(wi, ((0, hwp - hw), (0, 0)))

    cb = channel_tile if channel_tile is not None else _pick_channel_tile(C)
    assert C % cb == 0, f"channel_tile {cb} must divide C={C}"
    bb = batch_tile if batch_tile is not None else _pick_batch_tile(
        B, N, cb, np.dtype(x.dtype).itemsize, np.dtype(out_dtype).itemsize)
    assert B % bb == 0, f"batch_tile {bb} must divide B={B}"
    num_b = B // bb
    num_c = C // cb

    # Grid: (batch blocks, channel tiles).  Batch leads so the v7x megacore split
    # falls on the (usually larger, even) batch axis; F/G have constant block
    # indices and stay resident; wr/wi only re-DMA when the channel tile changes.
    # NOTE: pl.Buffered(3) on x deliberately omitted (marginal win, keep lowering
    # maximally robust); default double-buffering applies.
    out = pl.pallas_call(
        _global_filter_kernel,
        out_shape=jax.ShapeDtypeStruct((B, N, C), out_dtype),
        grid_spec=pltpu.PrefetchScalarGridSpec(
            num_scalar_prefetch=0,
            grid=(num_b, num_c),
            in_specs=[
                pl.BlockSpec((bb, N, cb), lambda bi, ci: (bi, 0, ci)),   # x
                pl.BlockSpec((hwp, cb), lambda bi, ci: (0, ci)),         # W re
                pl.BlockSpec((hwp, cb), lambda bi, ci: (0, ci)),         # W im
                pl.BlockSpec((hwp, N), lambda bi, ci: (0, 0)),           # F re
                pl.BlockSpec((hwp, N), lambda bi, ci: (0, 0)),           # F im
                pl.BlockSpec((N, hwp), lambda bi, ci: (0, 0)),           # G re
                pl.BlockSpec((N, hwp), lambda bi, ci: (0, 0)),           # G im
            ],
            out_specs=pl.BlockSpec((bb, N, cb), lambda bi, ci: (bi, 0, ci)),
        ),
        compiler_params=pltpu.CompilerParams(
            dimension_semantics=("parallel", "parallel")),
    )(x, wr, wi, f_r, f_i, g_r, g_i)
    return out


def global_filter_reference(x, complex_weight, a, b):
    """Pure-JAX reference (mirrors the torch forward exactly)."""
    B, N, C = x.shape
    x4 = x.reshape(B, a, b, C).astype(jnp.float32)
    xf = jnp.fft.rfft2(x4, axes=(1, 2), norm="ortho")
    w = complex_weight[..., 0] + 1j * complex_weight[..., 1]
    xf = xf * w
    y = jnp.fft.irfft2(xf, s=(a, b), axes=(1, 2), norm="ortho")
    return y.reshape(B, N, C)


if __name__ == "__main__":
    # Small shapes consistent with the module: GlobalFilter(dim=4, h=16, w=9)
    # applied to x of shape (B=2, N=16*16=256, C=4).
    B, a, b, C = 2, 16, 16, 4
    N = a * b
    w_half = b // 2 + 1

    key = jax.random.PRNGKey(0)
    kx, kw = jax.random.split(key)
    x = jax.random.normal(kx, (B, N, C), dtype=jnp.float32)
    # nn.Parameter(torch.randn(h, w, dim, 2) * 0.02) -> deterministic synthetic init
    complex_weight = jax.random.normal(kw, (a, w_half, C, 2), dtype=jnp.float32) * 0.02

    ref = global_filter_reference(x, complex_weight, a, b)
    ref_scale = float(jnp.max(jnp.abs(ref))) + 1e-12

    # Strict check with f32 MXU operands (test-only configuration).
    out_f32 = jax.block_until_ready(
        global_filter(x, complex_weight, a, b, compute_dtype=jnp.float32))
    assert out_f32.shape == (B, N, C), out_f32.shape
    rel_f32 = float(jnp.max(jnp.abs(out_f32 - ref))) / ref_scale
    assert rel_f32 < 1e-3, f"f32 relative error vs FFT reference: {rel_f32}"

    # Production default: bf16 MXU operands, f32 accumulation, f32 output.
    out_bf16 = jax.block_until_ready(global_filter(x, complex_weight, a, b))
    assert out_bf16.shape == (B, N, C), out_bf16.shape
    rel_bf16 = float(jnp.max(jnp.abs(out_bf16 - ref))) / ref_scale
    assert rel_bf16 < 5e-2, f"bf16 relative error vs FFT reference: {rel_bf16}"

    # Low-I/O path: bf16 activations in, bf16 out (halved HBM traffic end to end).
    out_lp = jax.block_until_ready(
        global_filter(x.astype(jnp.bfloat16), complex_weight, a, b,
                      out_dtype=jnp.bfloat16))
    assert out_lp.shape == (B, N, C), out_lp.shape
    rel_lp = float(jnp.max(jnp.abs(out_lp.astype(jnp.float32) - ref))) / ref_scale
    assert rel_lp < 5e-2, f"bf16-I/O relative error vs FFT reference: {rel_lp}"

    print("KERNEL_OK")
</pallas_src>

<mosaic_0001>
module attributes {stable_mosaic.version = 11 : i64} {
  func.func @_global_filter_kernel(%arg0: i32, %arg1: i32, %arg2: memref<1x256x4xf32, #tpu.memory_space<vmem>>, %arg3: memref<144x4xf32, #tpu.memory_space<vmem>>, %arg4: memref<144x4xf32, #tpu.memory_space<vmem>>, %arg5: memref<144x256xf32, #tpu.memory_space<vmem>>, %arg6: memref<144x256xf32, #tpu.memory_space<vmem>>, %arg7: memref<256x144xf32, #tpu.memory_space<vmem>>, %arg8: memref<256x144xf32, #tpu.memory_space<vmem>>, %arg9: memref<1x256x4xf32, #tpu.memory_space<vmem>>) attributes {dimension_semantics = [#tpu.dimension_semantics<parallel>, #tpu.dimension_semantics<parallel>], iteration_bounds = array<i64: 2, 1>, scalar_prefetch = 0 : i64, scratch_operands = 0 : i64, tpu.core_type = #tpu.core_type<tc>, window_params = [{transform_indices = @transform_0, window_bounds = array<i64: 1, 256, 4>}, {transform_indices = @transform_1, window_bounds = array<i64: 144, 4>}, {transform_indices = @transform_2, window_bounds = array<i64: 144, 4>}, {pipeline_mode = #tpu.pipeline_mode<synchronous>, transform_indices = @transform_3, window_bounds = array<i64: 144, 256>}, {pipeline_mode = #tpu.pipeline_mode<synchronous>, transform_indices = @transform_4, window_bounds = array<i64: 144, 256>}, {pipeline_mode = #tpu.pipeline_mode<synchronous>, transform_indices = @transform_5, window_bounds = array<i64: 256, 144>}, {pipeline_mode = #tpu.pipeline_mode<synchronous>, transform_indices = @transform_6, window_bounds = array<i64: 256, 144>}, {transform_indices = @transform_7, window_bounds = array<i64: 1, 256, 4>}]} {
    %c0 = arith.constant 0 : index
    %c0_0 = arith.constant 0 : index
    %0 = vector.load %arg5[%c0, %c0_0] : memref<144x256xf32, #tpu.memory_space<vmem>>, vector<144x256xf32>
    %c0_1 = arith.constant 0 : index
    %c0_2 = arith.constant 0 : index
    %1 = vector.load %arg6[%c0_1, %c0_2] : memref<144x256xf32, #tpu.memory_space<vmem>>, vector<144x256xf32>
    %c0_3 = arith.constant 0 : index
    %c0_4 = arith.constant 0 : index
    %2 = vector.load %arg7[%c0_3, %c0_4] : memref<256x144xf32, #tpu.memory_space<vmem>>, vector<256x144xf32>
    %c0_5 = arith.constant 0 : index
    %c0_6 = arith.constant 0 : index
    %3 = vector.load %arg8[%c0_5, %c0_6] : memref<256x144xf32, #tpu.memory_space<vmem>>, vector<256x144xf32>
    %c0_7 = arith.constant 0 : index
    %c0_8 = arith.constant 0 : index
    %4 = vector.load %arg3[%c0_7, %c0_8] : memref<144x4xf32, #tpu.memory_space<vmem>>, vector<144x4xf32>
    %c0_9 = arith.constant 0 : index
    %c0_10 = arith.constant 0 : index
    %5 = vector.load %arg4[%c0_9, %c0_10] : memref<144x4xf32, #tpu.memory_space<vmem>>, vector<144x4xf32>
    %c0_11 = arith.constant 0 : index
    %c0_12 = arith.constant 0 : index
    %c0_13 = arith.constant 0 : index
    %6 = vector.load %arg2[%c0_11, %c0_12, %c0_13] : memref<1x256x4xf32, #tpu.memory_space<vmem>>, vector<1x256x4xf32>
    %7 = vector.shape_cast %6 : vector<1x256x4xf32> to vector<256x4xf32>
    %cst = arith.constant dense<0.000000e+00> : vector<144x4xf32>
    %8 = tpu.matmul %0, %7, %cst {dimension_numbers = #tpu.dot_dimension_numbers<[1], [0], [0], [1], [0, 0, 1, 1], [], []>} : vector<144x256xf32>, vector<256x4xf32>, vector<144x4xf32> -> vector<144x4xf32>
    %cst_14 = arith.constant dense<0.000000e+00> : vector<144x4xf32>
    %9 = tpu.matmul %1, %7, %cst_14 {dimension_numbers = #tpu.dot_dimension_numbers<[1], [0], [0], [1], [0, 0, 1, 1], [], []>} : vector<144x256xf32>, vector<256x4xf32>, vector<144x4xf32> -> vector<144x4xf32>
    %10 = arith.mulf %8, %4 : vector<144x4xf32>
    %11 = arith.mulf %9, %5 : vector<144x4xf32>
    %12 = arith.subf %10, %11 : vector<144x4xf32>
    %13 = arith.mulf %8, %5 : vector<144x4xf32>
    %14 = arith.mulf %9, %4 : vector<144x4xf32>
    %15 = arith.addf %13, %14 : vector<144x4xf32>
    %cst_15 = arith.constant dense<0.000000e+00> : vector<256x4xf32>
    %16 = tpu.matmul %2, %12, %cst_15 {dimension_numbers = #tpu.dot_dimension_numbers<[1], [0], [0], [1], [0, 0, 1, 1], [], []>} : vector<256x144xf32>, vector<144x4xf32>, vector<256x4xf32> -> vector<256x4xf32>
    %cst_16 = arith.constant dense<0.000000e+00> : vector<256x4xf32>
    %17 = tpu.matmul %3, %15, %cst_16 {dimension_numbers = #tpu.dot_dimension_numbers<[1], [0], [0], [1], [0, 0, 1, 1], [], []>} : vector<256x144xf32>, vector<144x4xf32>, vector<256x4xf32> -> vector<256x4xf32>
    %18 = arith.addf %16, %17 : vector<256x4xf32>
    %c0_17 = arith.constant 0 : index
    %c0_18 = arith.constant 0 : index
    %c0_19 = arith.constant 0 : index
    %19 = vector.load %arg9[%c0_17, %c0_18, %c0_19] : memref<1x256x4xf32, #tpu.memory_space<vmem>>, vector<1x256x4xf32>
    %20 = vector.shape_cast %19 : vector<1x256x4xf32> to vector<256x4xf32>
    %21 = vector.shape_cast %18 : vector<256x4xf32> to vector<1x256x4xf32>
    tpu.vector_store %arg9[%c0_17, %c0_18, %c0_19], %21 {strides = array<i32>} : memref<1x256x4xf32, #tpu.memory_space<vmem>>, vector<1x256x4xf32>,
    return
  }
  func.func @transform_0(%arg0: i32, %arg1: i32) -> (i32, i32, i32) {
    %c0_i32 = arith.constant 0 : i32
    %c0_i32_0 = arith.constant 0 : i32
    return %arg0, %c0_i32, %arg1 : i32, i32, i32
  }
  func.func @transform_1(%arg0: i32, %arg1: i32) -> (i32, i32) {
    %c0_i32 = arith.constant 0 : i32
    %c0_i32_0 = arith.constant 0 : i32
    return %c0_i32, %arg1 : i32, i32
  }
  func.func @transform_2(%arg0: i32, %arg1: i32) -> (i32, i32) {
    %c0_i32 = arith.constant 0 : i32
    %c0_i32_0 = arith.constant 0 : i32
    return %c0_i32, %arg1 : i32, i32
  }
  func.func @transform_3(%arg0: i32, %arg1: i32) -> (i32, i32) {
    %c0_i32 = arith.constant 0 : i32
    %c0_i32_0 = arith.constant 0 : i32
    %c0_i32_1 = arith.constant 0 : i32
    return %c0_i32, %c0_i32_0 : i32, i32
  }
  func.func @transform_4(%arg0: i32, %arg1: i32) -> (i32, i32) {
    %c0_i32 = arith.constant 0 : i32
    %c0_i32_0 = arith.constant 0 : i32
    %c0_i32_1 = arith.constant 0 : i32
    return %c0_i32, %c0_i32_0 : i32, i32
  }
  func.func @transform_5(%arg0: i32, %arg1: i32) -> (i32, i32) {
    %c0_i32 = arith.constant 0 : i32
    %c0_i32_0 = arith.constant 0 : i32
    %c0_i32_1 = arith.constant 0 : i32
    return %c0_i32, %c0_i32_0 : i32, i32
  }
  func.func @transform_6(%arg0: i32, %arg1: i32) -> (i32, i32) {
    %c0_i32 = arith.constant 0 : i32
    %c0_i32_0 = arith.constant 0 : i32
    %c0_i32_1 = arith.constant 0 : i32
    return %c0_i32, %c0_i32_0 : i32, i32
  }
  func.func @transform_7(%arg0: i32, %arg1: i32) -> (i32, i32, i32) {
    %c0_i32 = arith.constant 0 : i32
    %c0_i32_0 = arith.constant 0 : i32
    return %arg0, %c0_i32, %arg1 : i32, i32, i32
  }
}

</mosaic_0001>

<llo_original>
// kernel: tpu_custom_call.1
$region0: #{tpu_custom_call.1}
  #allocation0 [shape = 'u32[]', space=smem, size = 0x4, offset = 0x4, fixed_abs, tag = 'smem constant byte address 0x4 - core index']
  #allocation1 [shape = 'u32[144,128]{1,0:T(1,128)}', space=vmem, size = 0x12000, scoped, tag = 'internal scratch']
  %s0 = inlined_call_operand.vmem [shape: f32[2,256,4], index: 0, kind: input, shape index: {}]
  %s1 = inlined_call_operand.vmem [shape: f32[144,4], index: 1, kind: input, shape index: {}]
  %s2 = inlined_call_operand.vmem [shape: f32[144,4], index: 2, kind: input, shape index: {}]
  %s3 = inlined_call_operand.vmem [shape: f32[144,256], index: 3, kind: input, shape index: {}]
  %s4 = inlined_call_operand.vmem [shape: f32[144,256], index: 4, kind: input, shape index: {}]
  %s5 = inlined_call_operand.vmem [shape: f32[256,144], index: 5, kind: input, shape index: {}]
  %s6 = inlined_call_operand.vmem [shape: f32[256,144], index: 6, kind: input, shape index: {}]
  %s7 = inlined_call_operand.vmem [shape: f32[2,256,4], index: 7, kind: output, shape index: {}]
  %s8 = sld [smem:[#allocation0]]
  $region61: #{tpu_custom_call.1} parent=0
    _
  %s10 = ssub.s32 1, %s8
  %s11 = scalar_select 0, %s10, %s8
  loop: start=0, step=1, limit=4
  $region2: #{tpu_custom_call.1} parent=0 // loop_pre_header
    _
  $region3: #{tpu_custom_call.1} parent=0 // loop_header
    %s13 = sphi 0, %s17
    %p14 = scmp.ge.s32.totalorder %s13, 4
    %s20 = sphi 0, %s32
    %s21 = sphi 0, %s28
    %s22 = sphi 0, %s20
    %s23 = sphi 0, %s21
    %s24 = sphi 0, %s22
    %s25 = sphi 0, %s23
    %s37 = sphi 0, %s39
    %s40 = sphi 0, %s37
    %s41 = sphi 0, %s40
    %s57 = sphi 0, %s41
    %s63 = sphi 0, %s65
    %s66 = sphi 0, %s63
    %s67 = sphi 0, %s66
    %s83 = sphi 0, %s67
    %s89 = sphi 0, %s91
    %s92 = sphi 0, %s89
    %s93 = sphi 0, %s92
    %s109 = sphi 0, %s93
    %s113 = sphi 0, %s113
    %s115 = sphi 0, %s113
    %s116 = sphi 0, %s115
    %s130 = sphi 0, %s116
    %s134 = sphi 0, %s134
    %s136 = sphi 0, %s134
    %s137 = sphi 0, %s136
    %s151 = sphi 0, %s137
    %s155 = sphi 0, %s155
    %s157 = sphi 0, %s155
    %s158 = sphi 0, %s157
    %s172 = sphi 0, %s158
    %s176 = sphi 0, %s176
    %s178 = sphi 0, %s176
    %s179 = sphi 0, %s178
    %s193 = sphi 0, %s179
    %s201 = sphi 0, %s203
    %s204 = sphi 0, %s201
    %s205 = sphi 0, %s204
    %s221 = sphi 0, %s205
  $region4: #{tpu_custom_call.1} parent=0 // loop_header_branch
    %16 = sbr.rel (%p14) target = $region8
  $region5: #{tpu_custom_call.1} parent=0 // loop_body
    %s18 = ssub.s32 %s13, 1
    %s19 = ssub.s32 %s13, 2
    %s26 = sadd.s32 1, %s21
    %p27 = scmp.ge.s32.totalorder %s26, 1
    %s28 = scalar_select %p27, 0, %s26
    %s29 = sadd.s32 1, %s20
    %s30 = scalar_select %p27, %s29, %s20
    %p31 = scmp.ge.s32.totalorder %s30, 2
    %s32 = scalar_select %p31, 0, %s30
    %s33 = ssub.s32 %s20, %s32
    %s34 = ssub.s32 %s21, %s28
    %s35 = sor.u32 %s33, %s34
    %p36 = scmp.eq.s32.totalorder %s35, 0
    %s38 = sadd.s32 %s37, 1
    %s39 = scalar_select %p36, %s37, %s38
    %p42 = pneg %p36
    %p43 = scmp.eq.s32.totalorder %s13, 1
    %p44 = por %p42, %p43
    %p45 = scmp.ne.s32.totalorder %s37, %s40
    %p46 = scmp.eq.s32.totalorder %s13, 0
    %p47 = por %p45, %p46
    %p48 = scmp.ne.s32.totalorder %s37, %s40
    %p49 = scmp.eq.s32.totalorder %s18, 1
    %p50 = por %p48, %p49
    %p51 = scmp.ne.s32.totalorder %s40, %s41
    %p52 = scmp.eq.s32.totalorder %s18, 0
    %p53 = por %p51, %p52
    %p54 = scmp.ne.s32.totalorder %s40, %s41
    %p55 = scmp.eq.s32.totalorder %s19, 1
    %p56 = por %p54, %p55
    %p58 = scmp.ne.s32.totalorder %s41, %s57
    %p59 = scmp.eq.s32.totalorder %s19, 0
    %p60 = por %p58, %p59
    %s61 = ssub.s32 %s21, %s28
    %p62 = scmp.eq.s32.totalorder %s61, 0
    %s64 = sadd.s32 %s63, 1
    %s65 = scalar_select %p62, %s63, %s64
    %p68 = pneg %p62
    %p69 = scmp.eq.s32.totalorder %s13, 1
    %p70 = por %p68, %p69
    %p71 = scmp.ne.s32.totalorder %s63, %s66
    %p72 = scmp.eq.s32.totalorder %s13, 0
    %p73 = por %p71, %p72
    %p74 = scmp.ne.s32.totalorder %s63, %s66
    %p75 = scmp.eq.s32.totalorder %s18, 1
    %p76 = por %p74, %p75
    %p77 = scmp.ne.s32.totalorder %s66, %s67
    %p78 = scmp.eq.s32.totalorder %s18, 0
    %p79 = por %p77, %p78
    %p80 = scmp.ne.s32.totalorder %s66, %s67
    %p81 = scmp.eq.s32.totalorder %s19, 1
    %p82 = por %p80, %p81
    %p84 = scmp.ne.s32.totalorder %s67, %s83
    %p85 = scmp.eq.s32.totalorder %s19, 0
    %p86 = por %p84, %p85
    %s87 = ssub.s32 %s21, %s28
    %p88 = scmp.eq.s32.totalorder %s87, 0
    %s90 = sadd.s32 %s89, 1
    %s91 = scalar_select %p88, %s89, %s90
    %p94 = pneg %p88
    %p95 = scmp.eq.s32.totalorder %s13, 1
    %p96 = por %p94, %p95
    %p97 = scmp.ne.s32.totalorder %s89, %s92
    %p98 = scmp.eq.s32.totalorder %s13, 0
    %p99 = por %p97, %p98
    %p100 = scmp.ne.s32.totalorder %s89, %s92
    %p101 = scmp.eq.s32.totalorder %s18, 1
    %p102 = por %p100, %p101
    %p103 = scmp.ne.s32.totalorder %s92, %s93
    %p104 = scmp.eq.s32.totalorder %s18, 0
    %p105 = por %p103, %p104
    %p106 = scmp.ne.s32.totalorder %s92, %s93
    %p107 = scmp.eq.s32.totalorder %s19, 1
    %p108 = por %p106, %p107
    %p110 = scmp.ne.s32.totalorder %s93, %s109
    %p111 = scmp.eq.s32.totalorder %s19, 0
    %p112 = por %p110, %p111
    %s114 = sadd.s32 %s113, 1
    %p117 = scmp.eq.s32.totalorder %s13, 1
    %p118 = scmp.ne.s32.totalorder %s113, %s115
    %p119 = scmp.eq.s32.totalorder %s13, 0
    %p120 = por %p118, %p119
    %p121 = scmp.ne.s32.totalorder %s113, %s115
    %p122 = scmp.eq.s32.totalorder %s18, 1
    %p123 = por %p121, %p122
    %p124 = scmp.ne.s32.totalorder %s115, %s116
    %p125 = scmp.eq.s32.totalorder %s18, 0
    %p126 = por %p124, %p125
    %p127 = scmp.ne.s32.totalorder %s115, %s116
    %p128 = scmp.eq.s32.totalorder %s19, 1
    %p129 = por %p127, %p128
    %p131 = scmp.ne.s32.totalorder %s116, %s130
    %p132 = scmp.eq.s32.totalorder %s19, 0
    %p133 = por %p131, %p132
    %s135 = sadd.s32 %s134, 1
    %p138 = scmp.eq.s32.totalorder %s13, 1
    %p139 = scmp.ne.s32.totalorder %s134, %s136
    %p140 = scmp.eq.s32.totalorder %s13, 0
    %p141 = por %p139, %p140
    %p142 = scmp.ne.s32.totalorder %s134, %s136
    %p143 = scmp.eq.s32.totalorder %s18, 1
    %p144 = por %p142, %p143
    %p145 = scmp.ne.s32.totalorder %s136, %s137
    %p146 = scmp.eq.s32.totalorder %s18, 0
    %p147 = por %p145, %p146
    %p148 = scmp.ne.s32.totalorder %s136, %s137
    %p149 = scmp.eq.s32.totalorder %s19, 1
    %p150 = por %p148, %p149
    %p152 = scmp.ne.s32.totalorder %s137, %s151
    %p153 = scmp.eq.s32.totalorder %s19, 0
    %p154 = por %p152, %p153
    %s156 = sadd.s32 %s155, 1
    %p159 = scmp.eq.s32.totalorder %s13, 1
    %p160 = scmp.ne.s32.totalorder %s155, %s157
    %p161 = scmp.eq.s32.totalorder %s13, 0
    %p162 = por %p160, %p161
    %p163 = scmp.ne.s32.totalorder %s155, %s157
    %p164 = scmp.eq.s32.totalorder %s18, 1
    %p165 = por %p163, %p164
    %p166 = scmp.ne.s32.totalorder %s157, %s158
    %p167 = scmp.eq.s32.totalorder %s18, 0
    %p168 = por %p166, %p167
    %p169 = scmp.ne.s32.totalorder %s157, %s158
    %p170 = scmp.eq.s32.totalorder %s19, 1
    %p171 = por %p169, %p170
    %p173 = scmp.ne.s32.totalorder %s158, %s172
    %p174 = scmp.eq.s32.totalorder %s19, 0
    %p175 = por %p173, %p174
    %s177 = sadd.s32 %s176, 1
    %p180 = scmp.eq.s32.totalorder %s13, 1
    %p181 = scmp.ne.s32.totalorder %s176, %s178
    %p182 = scmp.eq.s32.totalorder %s13, 0
    %p183 = por %p181, %p182
    %p184 = scmp.ne.s32.totalorder %s176, %s178
    %p185 = scmp.eq.s32.totalorder %s18, 1
    %p186 = por %p184, %p185
    %p187 = scmp.ne.s32.totalorder %s178, %s179
    %p188 = scmp.eq.s32.totalorder %s18, 0
    %p189 = por %p187, %p188
    %p190 = scmp.ne.s32.totalorder %s178, %s179
    %p191 = scmp.eq.s32.totalorder %s19, 1
    %p192 = por %p190, %p191
    %p194 = scmp.ne.s32.totalorder %s179, %s193
    %p195 = scmp.eq.s32.totalorder %s19, 0
    %p196 = por %p194, %p195
    %s197 = ssub.s32 %s20, %s32
    %s198 = ssub.s32 %s21, %s28
    %s199 = sor.u32 %s197, %s198
    %p200 = scmp.eq.s32.totalorder %s199, 0
    %s202 = sadd.s32 %s201, 1
    %s203 = scalar_select %p200, %s201, %s202
    %p206 = pneg %p200
    %p207 = scmp.eq.s32.totalorder %s13, 1
    %p208 = por %p206, %p207
    %p209 = scmp.ne.s32.totalorder %s201, %s204
    %p210 = scmp.eq.s32.totalorder %s13, 0
    %p211 = por %p209, %p210
    %p212 = scmp.ne.s32.totalorder %s201, %s204
    %p213 = scmp.eq.s32.totalorder %s18, 1
    %p214 = por %p212, %p213
    %p215 = scmp.ne.s32.totalorder %s204, %s205
    %p216 = scmp.eq.s32.totalorder %s18, 0
    %p217 = por %p215, %p216
    %p218 = scmp.ne.s32.totalorder %s204, %s205
    %p219 = scmp.eq.s32.totalorder %s19, 1
    %p220 = por %p218, %p219
    %p222 = scmp.ne.s32.totalorder %s205, %s221
    %p223 = scmp.eq.s32.totalorder %s19, 0
    %p224 = por %p222, %p223
    %p225 = scmp.le.s32.totalorder 1, %s13
    %p226 = scmp.lt.s32.totalorder %s13, 3
    %p227 = pnand %p225, %p226
    %p228 = pneg %p227
    // Predicated region
    $region9: #{tpu_custom_call.1} parent=5 // pred_check
      _
    $region10: #{tpu_custom_call.1} parent=5 // pred_check_branch
      %230 = sbr.rel (%p227) target = $region12
    $region11: #{tpu_custom_call.1} parent=5 // pred_region
      %s231 = ssub.s32 %s13, 1
      // Predicated region
      $region13: #{tpu_custom_call.1} parent=11 // pred_check
        %p232 = pneg %p79
      $region14: #{tpu_custom_call.1} parent=11 // pred_check_branch
        %234 = sbr.rel (%p232) target = $region16
      $region15: #{tpu_custom_call.1} parent=11 // pred_region
        %p235 = scmp.lt.s32.totalorder %s23, 0
        %s236 = scalar_select %p235, %s23, 0
        %s237 = smul.addr %s236, 8
        %s238 = scalar_lea.vmem %s1, %s237
      $region16: #{tpu_custom_call.1} parent=11 // pred_fallthru
        _
      // Predicated region
      $region17: #{tpu_custom_call.1} parent=11 // pred_check
        %p239 = pneg %p105
      $region18: #{tpu_custom_call.1} parent=11 // pred_check_branch
        %241 = sbr.rel (%p239) target = $region20
      $region19: #{tpu_custom_call.1} parent=11 // pred_region
        %p242 = scmp.lt.s32.totalorder %s23, 0
        %s243 = scalar_select %p242, %s23, 0
        %s244 = smul.addr %s243, 8
        %s245 = scalar_lea.vmem %s2, %s244
      $region20: #{tpu_custom_call.1} parent=11 // pred_fallthru
        _
      // Predicated region
      $region21: #{tpu_custom_call.1} parent=11 // pred_check
        %p246 = pneg %p126
      $region22: #{tpu_custom_call.1} parent=11 // pred_check_branch
        %248 = sbr.rel (%p246) target = $region24
      $region23: #{tpu_custom_call.1} parent=11 // pred_region
        _
      $region24: #{tpu_custom_call.1} parent=11 // pred_fallthru
        _
      // Predicated region
      $region25: #{tpu_custom_call.1} parent=11 // pred_check
        %p249 = pneg %p147
      $region26: #{tpu_custom_call.1} parent=11 // pred_check_branch
        %251 = sbr.rel (%p249) target = $region28
      $region27: #{tpu_custom_call.1} parent=11 // pred_region
        _
      $region28: #{tpu_custom_call.1} parent=11 // pred_fallthru
        _
      // Predicated region
      $region29: #{tpu_custom_call.1} parent=11 // pred_check
        %p252 = pneg %p168
      $region30: #{tpu_custom_call.1} parent=11 // pred_check_branch
        %254 = sbr.rel (%p252) target = $region32
      $region31: #{tpu_custom_call.1} parent=11 // pred_region
        _
      $region32: #{tpu_custom_call.1} parent=11 // pred_fallthru
        _
      // Predicated region
      $region33: #{tpu_custom_call.1} parent=11 // pred_check
        %p255 = pneg %p189
      $region34: #{tpu_custom_call.1} parent=11 // pred_check_branch
        %257 = sbr.rel (%p255) target = $region36
      $region35: #{tpu_custom_call.1} parent=11 // pred_region
        _
      $region36: #{tpu_custom_call.1} parent=11 // pred_fallthru
        _
    $region12: #{tpu_custom_call.1} parent=5 // pred_fallthru
      _
    %p258 = scmp.lt.s32.totalorder %s13, 2
    // Predicated region
    $region37: #{tpu_custom_call.1} parent=5 // pred_check
      %p259 = pneg %p258
    $region38: #{tpu_custom_call.1} parent=5 // pred_check_branch
      %261 = sbr.rel (%p259) target = $region40
    $region39: #{tpu_custom_call.1} parent=5 // pred_region
      // Predicated region
      $region41: #{tpu_custom_call.1} parent=39 // pred_check
        %p262 = pneg %p47
      $region42: #{tpu_custom_call.1} parent=39 // pred_check_branch
        %264 = sbr.rel (%p262) target = $region44
      $region43: #{tpu_custom_call.1} parent=39 // pred_region
        %p265 = scmp.lt.s32.totalorder %s20, 1
        %s266 = scalar_select %p265, %s20, 1
        %p267 = scmp.lt.s32.totalorder %s21, 0
        %s268 = scalar_select %p267, %s21, 0
        %s269 = smul.addr %s266, 32
        %s270 = sadd.s32 %s268, %s269
        %s271 = smul.addr %s270, 8
        %s272 = scalar_lea.vmem %s0, %s271
      $region44: #{tpu_custom_call.1} parent=39 // pred_fallthru
        _
    $region40: #{tpu_custom_call.1} parent=5 // pred_fallthru
      _
    %p273 = scmp.le.s32.totalorder 1, %s13
    %p274 = scmp.lt.s32.totalorder %s13, 3
    %p275 = pnand %p273, %p274
    %p276 = pneg %p275
    // Predicated region
    $region45: #{tpu_custom_call.1} parent=5 // pred_check
      _
    $region46: #{tpu_custom_call.1} parent=5 // pred_check_branch
      %278 = sbr.rel (%p275) target = $region48
    $region47: #{tpu_custom_call.1} parent=5 // pred_region
      %s279 = ssub.s32 %s13, 1
      %p280 = scmp.lt.s32.totalorder %s22, 1
      %s281 = scalar_select %p280, %s22, 1
      %p282 = scmp.lt.s32.totalorder %s23, 0
      %s283 = scalar_select %p282, %s23, 0
      %s284 = smul.addr %s281, 32
      %s285 = sadd.s32 %s283, %s284
      %s286 = smul.addr %s285, 8
      %s287 = scalar_lea.vmem %s0, %s286
      %p288 = pneg %p53
      %p289 = pneg %p50
      %p290 = scmp.lt.s32.totalorder %s23, 0
      %s291 = scalar_select %p290, %s23, 0
      %s292 = smul.addr %s291, 8
      %s293 = scalar_lea.vmem %s1, %s292
      %p294 = pneg %p79
      %p295 = pneg %p76
      %p296 = scmp.lt.s32.totalorder %s23, 0
      %s297 = scalar_select %p296, %s23, 0
      %s298 = smul.addr %s297, 8
      %s299 = scalar_lea.vmem %s2, %s298
      %p300 = pneg %p105
      %p301 = pneg %p102
      %p302 = pneg %p126
      %p303 = pneg %p123
      %p304 = pneg %p147
      %p305 = pneg %p144
      %p306 = pneg %p168
      %p307 = pneg %p165
      %p308 = pneg %p189
      %p309 = pneg %p186
      %p310 = pneg %p217
      %p311 = pneg %p214
      %p312 = scmp.lt.s32.totalorder %s22, 1
      %s313 = scalar_select %p312, %s22, 1
      %p314 = scmp.lt.s32.totalorder %s23, 0
      %s315 = scalar_select %p314, %s23, 0
      %s316 = smul.addr %s313, 32
      %s317 = sadd.s32 %s315, %s316
      %s318 = smul.addr %s317, 8
      %s319 = scalar_lea.vmem %s7, %s318
      %p320 = scmp.lt.s32.totalorder %s22, 1
      %s321 = scalar_select %p320, %s22, 1
      %p322 = scmp.lt.s32.totalorder %s23, 0
      %s323 = scalar_select %p322, %s23, 0
      %s324 = smul.addr %s321, 32
      %s325 = sadd.s32 %s323, %s324
      %s326 = smul.addr %s325, 8
      %s327 = scalar_lea.vmem %s0, %s326
      %p328 = scmp.lt.s32.totalorder %s23, 0
      %s329 = scalar_select %p328, %s23, 0
      %s330 = smul.addr %s329, 8
      %s331 = scalar_lea.vmem %s1, %s330
      %p332 = scmp.lt.s32.totalorder %s23, 0
      %s333 = scalar_select %p332, %s23, 0
      %s334 = smul.addr %s333, 8
      %s335 = scalar_lea.vmem %s2, %s334
      %p336 = scmp.lt.s32.totalorder %s22, 1
      %s337 = scalar_select %p336, %s22, 1
      %p338 = scmp.lt.s32.totalorder %s23, 0
      %s339 = scalar_select %p338, %s23, 0
      %s340 = smul.addr %s337, 32
      %s341 = sadd.s32 %s339, %s340
      %s342 = smul.addr %s341, 8
      %s343 = scalar_lea.vmem %s7, %s342
      %v344 = vld [vmem:[%s3] sm:$0xff]
      %v345 = vld [vmem:[%s3 + $0x8] sm:$0xff]
      %v346 = vld [vmem:[%s3 + $0x10] sm:$0xff]
      %v347 = vld [vmem:[%s3 + $0x18] sm:$0xff]
      %v348 = vld [vmem:[%s3 + $0x20] sm:$0xff]
      %v349 = vld [vmem:[%s3 + $0x28] sm:$0xff]
      %v350 = vld [vmem:[%s3 + $0x30] sm:$0xff]
      %v351 = vld [vmem:[%s3 + $0x38] sm:$0xff]
      %v352 = vld [vmem:[%s3 + $0x40] sm:$0xff]
      %v353 = vld [vmem:[%s3 + $0x48] sm:$0xff]
      %v354 = vld [vmem:[%s3 + $0x50] sm:$0xff]
      %v355 = vld [vmem:[%s3 + $0x58] sm:$0xff]
      %v356 = vld [vmem:[%s3 + $0x60] sm:$0xff]
      %v357 = vld [vmem:[%s3 + $0x68] sm:$0xff]
      %v358 = vld [vmem:[%s3 + $0x70] sm:$0xff]
      %v359 = vld [vmem:[%s3 + $0x78] sm:$0xff]
      %v360 = vld [vmem:[%s3 + $0x80] sm:$0xff]
      %v361 = vld [vmem:[%s3 + $0x88] sm:$0xff]
      %v362 = vld [vmem:[%s3 + $0x90] sm:$0xff]
      %v363 = vld [vmem:[%s3 + $0x98] sm:$0xff]
      %v364 = vld [vmem:[%s3 + $0xa0] sm:$0xff]
      %v365 = vld [vmem:[%s3 + $0xa8] sm:$0xff]
      %v366 = vld [vmem:[%s3 + $0xb0] sm:$0xff]
      %v367 = vld [vmem:[%s3 + $0xb8] sm:$0xff]
      %v368 = vld [vmem:[%s3 + $0xc0] sm:$0xff]
      %v369 = vld [vmem:[%s3 + $0xc8] sm:$0xff]
      %v370 = vld [vmem:[%s3 + $0xd0] sm:$0xff]
      %v371 = vld [vmem:[%s3 + $0xd8] sm:$0xff]
      %v372 = vld [vmem:[%s3 + $0xe0] sm:$0xff]
      %v373 = vld [vmem:[%s3 + $0xe8] sm:$0xff]
      %v374 = vld [vmem:[%s3 + $0xf0] sm:$0xff]
      %v375 = vld [vmem:[%s3 + $0xf8] sm:$0xff]
      %v376 = vld [vmem:[%s3 + $0x100] sm:$0xff]
      %v377 = vld [vmem:[%s3 + $0x108] sm:$0xff]
      %v378 = vld [vmem:[%s3 + $0x110] sm:$0xff]
      %v379 = vld [vmem:[%s3 + $0x118] sm:$0xff]
      %v380 = vld [vmem:[%s4] sm:$0xff]
      %v381 = vld [vmem:[%s4 + $0x8] sm:$0xff]
      %v382 = vld [vmem:[%s4 + $0x10] sm:$0xff]
      %v383 = vld [vmem:[%s4 + $0x18] sm:$0xff]
      %v384 = vld [vmem:[%s4 + $0x20] sm:$0xff]
      %v385 = vld [vmem:[%s4 + $0x28] sm:$0xff]
      %v386 = vld [vmem:[%s4 + $0x30] sm:$0xff]
      %v387 = vld [vmem:[%s4 + $0x38] sm:$0xff]
      %v388 = vld [vmem:[%s4 + $0x40] sm:$0xff]
      %v389 = vld [vmem:[%s4 + $0x48] sm:$0xff]
      %v390 = vld [vmem:[%s4 + $0x50] sm:$0xff]
      %v391 = vld [vmem:[%s4 + $0x58] sm:$0xff]
      %v392 = vld [vmem:[%s4 + $0x60] sm:$0xff]
      %v393 = vld [vmem:[%s4 + $0x68] sm:$0xff]
      %v394 = vld [vmem:[%s4 + $0x70] sm:$0xff]
      %v395 = vld [vmem:[%s4 + $0x78] sm:$0xff]
      %v396 = vld [vmem:[%s4 + $0x80] sm:$0xff]
      %v397 = vld [vmem:[%s4 + $0x88] sm:$0xff]
      %v398 = vld [vmem:[%s4 + $0x90] sm:$0xff]
      %v399 = vld [vmem:[%s4 + $0x98] sm:$0xff]
      %v400 = vld [vmem:[%s4 + $0xa0] sm:$0xff]
      %v401 = vld [vmem:[%s4 + $0xa8] sm:$0xff]
      %v402 = vld [vmem:[%s4 + $0xb0] sm:$0xff]
      %v403 = vld [vmem:[%s4 + $0xb8] sm:$0xff]
      %v404 = vld [vmem:[%s4 + $0xc0] sm:$0xff]
      %v405 = vld [vmem:[%s4 + $0xc8] sm:$0xff]
      %v406 = vld [vmem:[%s4 + $0xd0] sm:$0xff]
      %v407 = vld [vmem:[%s4 + $0xd8] sm:$0xff]
      %v408 = vld [vmem:[%s4 + $0xe0] sm:$0xff]
      %v409 = vld [vmem:[%s4 + $0xe8] sm:$0xff]
      %v410 = vld [vmem:[%s4 + $0xf0] sm:$0xff]
      %v411 = vld [vmem:[%s4 + $0xf8] sm:$0xff]
      %v412 = vld [vmem:[%s4 + $0x100] sm:$0xff]
      %v413 = vld [vmem:[%s4 + $0x108] sm:$0xff]
      %v414 = vld [vmem:[%s4 + $0x110] sm:$0xff]
      %v415 = vld [vmem:[%s4 + $0x118] sm:$0xff]
      %v416 = vld [vmem:[%s5] sm:$0xff]
      %v417 = vld [vmem:[%s5 + $0x8] sm:$0xff]
      %v418 = vld [vmem:[%s5 + $0x10] sm:$0xff]
      %v419 = vld [vmem:[%s5 + $0x18] sm:$0xff]
      %v420 = vld [vmem:[%s5 + $0x20] sm:$0xff]
      %v421 = vld [vmem:[%s5 + $0x28] sm:$0xff]
      %v422 = vld [vmem:[%s5 + $0x30] sm:$0xff]
      %v423 = vld [vmem:[%s5 + $0x38] sm:$0xff]
      %v424 = vld [vmem:[%s5 + $0x40] sm:$0xff]
      %v425 = vld [vmem:[%s5 + $0x48] sm:$0xff]
      %v426 = vld [vmem:[%s5 + $0x50] sm:$0xff]
      %v427 = vld [vmem:[%s5 + $0x58] sm:$0xff]
      %v428 = vld [vmem:[%s5 + $0x60] sm:$0xff]
      %v429 = vld [vmem:[%s5 + $0x68] sm:$0xff]
      %v430 = vld [vmem:[%s5 + $0x70] sm:$0xff]
      %v431 = vld [vmem:[%s5 + $0x78] sm:$0xff]
      %v432 = vld [vmem:[%s5 + $0x80] sm:$0xff]
      %v433 = vld [vmem:[%s5 + $0x88] sm:$0xff]
      %v434 = vld [vmem:[%s5 + $0x90] sm:$0xff]
      %v435 = vld [vmem:[%s5 + $0x98] sm:$0xff]
      %v436 = vld [vmem:[%s5 + $0xa0] sm:$0xff]
      %v437 = vld [vmem:[%s5 + $0xa8] sm:$0xff]
      %v438 = vld [vmem:[%s5 + $0xb0] sm:$0xff]
      %v439 = vld [vmem:[%s5 + $0xb8] sm:$0xff]
      %v440 = vld [vmem:[%s5 + $0xc0] sm:$0xff]
      %v441 = vld [vmem:[%s5 + $0xc8] sm:$0xff]
      %v442 = vld [vmem:[%s5 + $0xd0] sm:$0xff]
      %v443 = vld [vmem:[%s5 + $0xd8] sm:$0xff]
      %v444 = vld [vmem:[%s5 + $0xe0] sm:$0xff]
      %v445 = vld [vmem:[%s5 + $0xe8] sm:$0xff]
      %v446 = vld [vmem:[%s5 + $0xf0] sm:$0xff]
      %v447 = vld [vmem:[%s5 + $0xf8] sm:$0xff]
      %v448 = vld [vmem:[%s5 + $0x100] sm:$0xff]
      %v449 = vld [vmem:[%s5 + $0x108] sm:$0xff]
      %v450 = vld [vmem:[%s5 + $0x110] sm:$0xff]
      %v451 = vld [vmem:[%s5 + $0x118] sm:$0xff]
      %v452 = vld [vmem:[%s5 + $0x120] sm:$0xff]
      %v453 = vld [vmem:[%s5 + $0x128] sm:$0xff]
      %v454 = vld [vmem:[%s5 + $0x130] sm:$0xff]
      %v455 = vld [vmem:[%s5 + $0x138] sm:$0xff]
      %v456 = vld [vmem:[%s5 + $0x140] sm:$0xff]
      %v457 = vld [vmem:[%s5 + $0x148] sm:$0xff]
      %v458 = vld [vmem:[%s5 + $0x150] sm:$0xff]
      %v459 = vld [vmem:[%s5 + $0x158] sm:$0xff]
      %v460 = vld [vmem:[%s5 + $0x160] sm:$0xff]
      %v461 = vld [vmem:[%s5 + $0x168] sm:$0xff]
      %v462 = vld [vmem:[%s5 + $0x170] sm:$0xff]
      %v463 = vld [vmem:[%s5 + $0x178] sm:$0xff]
      %v464 = vld [vmem:[%s5 + $0x180] sm:$0xff]
      %v465 = vld [vmem:[%s5 + $0x188] sm:$0xff]
      %v466 = vld [vmem:[%s5 + $0x190] sm:$0xff]
      %v467 = vld [vmem:[%s5 + $0x198] sm:$0xff]
      %v468 = vld [vmem:[%s5 + $0x1a0] sm:$0xff]
      %v469 = vld [vmem:[%s5 + $0x1a8] sm:$0xff]
      %v470 = vld [vmem:[%s5 + $0x1b0] sm:$0xff]
      %v471 = vld [vmem:[%s5 + $0x1b8] sm:$0xff]
      %v472 = vld [vmem:[%s5 + $0x1c0] sm:$0xff]
      %v473 = vld [vmem:[%s5 + $0x1c8] sm:$0xff]
      %v474 = vld [vmem:[%s5 + $0x1d0] sm:$0xff]
      %v475 = vld [vmem:[%s5 + $0x1d8] sm:$0xff]
      %v476 = vld [vmem:[%s5 + $0x1e0] sm:$0xff]
      %v477 = vld [vmem:[%s5 + $0x1e8] sm:$0xff]
      %v478 = vld [vmem:[%s5 + $0x1f0] sm:$0xff]
      %v479 = vld [vmem:[%s5 + $0x1f8] sm:$0xff]
      %v480 = vld [vmem:[%s6] sm:$0xff]
      %v481 = vld [vmem:[%s6 + $0x8] sm:$0xff]
      %v482 = vld [vmem:[%s6 + $0x10] sm:$0xff]
      %v483 = vld [vmem:[%s6 + $0x18] sm:$0xff]
      %v484 = vld [vmem:[%s6 + $0x20] sm:$0xff]
      %v485 = vld [vmem:[%s6 + $0x28] sm:$0xff]
      %v486 = vld [vmem:[%s6 + $0x30] sm:$0xff]
      %v487 = vld [vmem:[%s6 + $0x38] sm:$0xff]
      %v488 = vld [vmem:[%s6 + $0x40] sm:$0xff]
      %v489 = vld [vmem:[%s6 + $0x48] sm:$0xff]
      %v490 = vld [vmem:[%s6 + $0x50] sm:$0xff]
      %v491 = vld [vmem:[%s6 + $0x58] sm:$0xff]
      %v492 = vld [vmem:[%s6 + $0x60] sm:$0xff]
      %v493 = vld [vmem:[%s6 + $0x68] sm:$0xff]
      %v494 = vld [vmem:[%s6 + $0x70] sm:$0xff]
      %v495 = vld [vmem:[%s6 + $0x78] sm:$0xff]
      %v496 = vld [vmem:[%s6 + $0x80] sm:$0xff]
      %v497 = vld [vmem:[%s6 + $0x88] sm:$0xff]
      %v498 = vld [vmem:[%s6 + $0x90] sm:$0xff]
      %v499 = vld [vmem:[%s6 + $0x98] sm:$0xff]
      %v500 = vld [vmem:[%s6 + $0xa0] sm:$0xff]
      %v501 = vld [vmem:[%s6 + $0xa8] sm:$0xff]
      %v502 = vld [vmem:[%s6 + $0xb0] sm:$0xff]
      %v503 = vld [vmem:[%s6 + $0xb8] sm:$0xff]
      %v504 = vld [vmem:[%s6 + $0xc0] sm:$0xff]
      %v505 = vld [vmem:[%s6 + $0xc8] sm:$0xff]
      %v506 = vld [vmem:[%s6 + $0xd0] sm:$0xff]
      %v507 = vld [vmem:[%s6 + $0xd8] sm:$0xff]
      %v508 = vld [vmem:[%s6 + $0xe0] sm:$0xff]
      %v509 = vld [vmem:[%s6 + $0xe8] sm:$0xff]
      %v510 = vld [vmem:[%s6 + $0xf0] sm:$0xff]
      %v511 = vld [vmem:[%s6 + $0xf8] sm:$0xff]
      %v512 = vld [vmem:[%s6 + $0x100] sm:$0xff]
      %v513 = vld [vmem:[%s6 + $0x108] sm:$0xff]
      %v514 = vld [vmem:[%s6 + $0x110] sm:$0xff]
      %v515 = vld [vmem:[%s6 + $0x118] sm:$0xff]
      %v516 = vld [vmem:[%s6 + $0x120] sm:$0xff]
      %v517 = vld [vmem:[%s6 + $0x128] sm:$0xff]
      %v518 = vld [vmem:[%s6 + $0x130] sm:$0xff]
      %v519 = vld [vmem:[%s6 + $0x138] sm:$0xff]
      %v520 = vld [vmem:[%s6 + $0x140] sm:$0xff]
      %v521 = vld [vmem:[%s6 + $0x148] sm:$0xff]
      %v522 = vld [vmem:[%s6 + $0x150] sm:$0xff]
      %v523 = vld [vmem:[%s6 + $0x158] sm:$0xff]
      %v524 = vld [vmem:[%s6 + $0x160] sm:$0xff]
      %v525 = vld [vmem:[%s6 + $0x168] sm:$0xff]
      %v526 = vld [vmem:[%s6 + $0x170] sm:$0xff]
      %v527 = vld [vmem:[%s6 + $0x178] sm:$0xff]
      %v528 = vld [vmem:[%s6 + $0x180] sm:$0xff]
      %v529 = vld [vmem:[%s6 + $0x188] sm:$0xff]
      %v530 = vld [vmem:[%s6 + $0x190] sm:$0xff]
      %v531 = vld [vmem:[%s6 + $0x198] sm:$0xff]
      %v532 = vld [vmem:[%s6 + $0x1a0] sm:$0xff]
      %v533 = vld [vmem:[%s6 + $0x1a8] sm:$0xff]
      %v534 = vld [vmem:[%s6 + $0x1b0] sm:$0xff]
      %v535 = vld [vmem:[%s6 + $0x1b8] sm:$0xff]
      %v536 = vld [vmem:[%s6 + $0x1c0] sm:$0xff]
      %v537 = vld [vmem:[%s6 + $0x1c8] sm:$0xff]
      %v538 = vld [vmem:[%s6 + $0x1d0] sm:$0xff]
      %v539 = vld [vmem:[%s6 + $0x1d8] sm:$0xff]
      %v540 = vld [vmem:[%s6 + $0x1e0] sm:$0xff]
      %v541 = vld [vmem:[%s6 + $0x1e8] sm:$0xff]
      %v542 = vld [vmem:[%s6 + $0x1f0] sm:$0xff]
      %v543 = vld [vmem:[%s6 + $0x1f8] sm:$0xff]
      %v544 = vld [vmem:[%s331] sm:$0xff]
      %v545 = vld [vmem:[%s331 + $0x8] sm:$0xff]
      %v546 = vld [vmem:[%s331 + $0x10] sm:$0xff]
      %v547 = vld [vmem:[%s331 + $0x18] sm:$0xff]
      %v548 = vld [vmem:[%s331 + $0x20] sm:$0xff]
      %v549 = vld [vmem:[%s331 + $0x28] sm:$0xff]
      %v550 = vld [vmem:[%s331 + $0x30] sm:$0xff]
      %v551 = vld [vmem:[%s331 + $0x38] sm:$0xff]
      %v552 = vld [vmem:[%s331 + $0x40] sm:$0xff]
      %v553 = vld [vmem:[%s331 + $0x48] sm:$0xff]
      %v554 = vld [vmem:[%s331 + $0x50] sm:$0xff]
      %v555 = vld [vmem:[%s331 + $0x58] sm:$0xff]
      %v556 = vld [vmem:[%s331 + $0x60] sm:$0xff]
      %v557 = vld [vmem:[%s331 + $0x68] sm:$0xff]
      %v558 = vld [vmem:[%s331 + $0x70] sm:$0xff]
      %v559 = vld [vmem:[%s331 + $0x78] sm:$0xff]
      %v560 = vld [vmem:[%s331 + $0x80] sm:$0xff]
      %v561 = vld [vmem:[%s331 + $0x88] sm:$0xff]
      %v562 = vld [vmem:[%s335] sm:$0xff]
      %v563 = vld [vmem:[%s335 + $0x8] sm:$0xff]
      %v564 = vld [vmem:[%s335 + $0x10] sm:$0xff]
      %v565 = vld [vmem:[%s335 + $0x18] sm:$0xff]
      %v566 = vld [vmem:[%s335 + $0x20] sm:$0xff]
      %v567 = vld [vmem:[%s335 + $0x28] sm:$0xff]
      %v568 = vld [vmem:[%s335 + $0x30] sm:$0xff]
      %v569 = vld [vmem:[%s335 + $0x38] sm:$0xff]
      %v570 = vld [vmem:[%s335 + $0x40] sm:$0xff]
      %v571 = vld [vmem:[%s335 + $0x48] sm:$0xff]
      %v572 = vld [vmem:[%s335 + $0x50] sm:$0xff]
      %v573 = vld [vmem:[%s335 + $0x58] sm:$0xff]
      %v574 = vld [vmem:[%s335 + $0x60] sm:$0xff]
      %v575 = vld [vmem:[%s335 + $0x68] sm:$0xff]
      %v576 = vld [vmem:[%s335 + $0x70] sm:$0xff]
      %v577 = vld [vmem:[%s335 + $0x78] sm:$0xff]
      %v578 = vld [vmem:[%s335 + $0x80] sm:$0xff]
      %v579 = vld [vmem:[%s335 + $0x88] sm:$0xff]
      %v580 = vld [vmem:[%s327] sm:$0xff]
      %v581 = vld [vmem:[%s327 + $0x8] sm:$0xff]
      %v582 = vld [vmem:[%s327 + $0x10] sm:$0xff]
      %v583 = vld [vmem:[%s327 + $0x18] sm:$0xff]
      %v584 = vld [vmem:[%s327 + $0x20] sm:$0xff]
      %v585 = vld [vmem:[%s327 + $0x28] sm:$0xff]
      %v586 = vld [vmem:[%s327 + $0x30] sm:$0xff]
      %v587 = vld [vmem:[%s327 + $0x38] sm:$0xff]
      %v588 = vld [vmem:[%s327 + $0x40] sm:$0xff]
      %v589 = vld [vmem:[%s327 + $0x48] sm:$0xff]
      %v590 = vld [vmem:[%s327 + $0x50] sm:$0xff]
      %v591 = vld [vmem:[%s327 + $0x58] sm:$0xff]
      %v592 = vld [vmem:[%s327 + $0x60] sm:$0xff]
      %v593 = vld [vmem:[%s327 + $0x68] sm:$0xff]
      %v594 = vld [vmem:[%s327 + $0x70] sm:$0xff]
      %v595 = vld [vmem:[%s327 + $0x78] sm:$0xff]
      %v596 = vld [vmem:[%s327 + $0x80] sm:$0xff]
      %v597 = vld [vmem:[%s327 + $0x88] sm:$0xff]
      %v598 = vld [vmem:[%s327 + $0x90] sm:$0xff]
      %v599 = vld [vmem:[%s327 + $0x98] sm:$0xff]
      %v600 = vld [vmem:[%s327 + $0xa0] sm:$0xff]
      %v601 = vld [vmem:[%s327 + $0xa8] sm:$0xff]
      %v602 = vld [vmem:[%s327 + $0xb0] sm:$0xff]
      %v603 = vld [vmem:[%s327 + $0xb8] sm:$0xff]
      %v604 = vld [vmem:[%s327 + $0xc0] sm:$0xff]
      %v605 = vld [vmem:[%s327 + $0xc8] sm:$0xff]
      %v606 = vld [vmem:[%s327 + $0xd0] sm:$0xff]
      %v607 = vld [vmem:[%s327 + $0xd8] sm:$0xff]
      %v608 = vld [vmem:[%s327 + $0xe0] sm:$0xff]
      %v609 = vld [vmem:[%s327 + $0xe8] sm:$0xff]
      %v610 = vld [vmem:[%s327 + $0xf0] sm:$0xff]
      %v611 = vld [vmem:[%s327 + $0xf8] sm:$0xff]
      %612 = vmatprep.subr.mxu0 0.0
      %613 = vmatpush1.msra.mxu0 %v580
      %614 = vmatprep.subr.mxu0 0.0
      %615 = vmatpush1.msra.mxu0 %v581
      %616 = vmatprep.subr.mxu0 0.0
      %617 = vmatpush1.msra.mxu0 %v582
      %618 = vmatprep.subr.mxu0 0.0
      %619 = vmatpush1.msra.mxu0 %v583
      %620 = vmatprep.subr.mxu0 0.0
      %621 = vmatpush1.msra.mxu0 %v584
      %622 = vmatprep.subr.mxu0 0.0
      %623 = vmatpush1.msra.mxu0 %v585
      %624 = vmatprep.subr.mxu0 0.0
      %625 = vmatpush1.msra.mxu0 %v586
      %626 = vmatprep.subr.mxu0 0.0
      %627 = vmatpush1.msra.mxu0 %v587
      %628 = vmatprep.subr.mxu0 0.0
      %629 = vmatpush1.msra.mxu0 %v588
      %630 = vmatprep.subr.mxu0 0.0
      %631 = vmatpush1.msra.mxu0 %v589
      %632 = vmatprep.subr.mxu0 0.0
      %633 = vmatpush1.msra.mxu0 %v590
      %634 = vmatprep.subr.mxu0 0.0
      %635 = vmatpush1.msra.mxu0 %v591
      %636 = vmatprep.subr.mxu0 0.0
      %637 = vmatpush1.msra.mxu0 %v592
      %638 = vmatprep.subr.mxu0 0.0
      %639 = vmatpush1.msra.mxu0 %v593
      %640 = vmatprep.subr.mxu0 0.0
      %641 = vmatpush1.msra.mxu0 %v594
      %642 = vmatprep.subr.mxu0 0.0
      %643 = vmatpush1.msra.mxu0 %v595
      %644 = vmatprep.subr.mxu0 0.0
      %645 = vmatpush1.msra.mxu0 %v596
      %646 = vmatprep.subr.mxu0 0.0
      %647 = vmatpush1.msra.mxu0 %v597
      %648 = vmatprep.subr.mxu0 0.0
      %649 = vmatpush1.msra.mxu0 %v598
      %650 = vmatprep.subr.mxu0 0.0
      %651 = vmatpush1.msra.mxu0 %v599
      %652 = vmatprep.subr.mxu0 0.0
      %653 = vmatpush1.msra.mxu0 %v600
      %654 = vmatprep.subr.mxu0 0.0
      %655 = vmatpush1.msra.mxu0 %v601
      %656 = vmatprep.subr.mxu0 0.0
      %657 = vmatpush1.msra.mxu0 %v602
      %658 = vmatprep.subr.mxu0 0.0
      %659 = vmatpush1.msra.mxu0 %v603
      %660 = vmatprep.subr.mxu0 0.0
      %661 = vmatpush1.msra.mxu0 %v604
      %662 = vmatprep.subr.mxu0 0.0
      %663 = vmatpush1.msra.mxu0 %v605
      %664 = vmatprep.subr.mxu0 0.0
      %665 = vmatpush1.msra.mxu0 %v606
      %666 = vmatprep.subr.mxu0 0.0
      %667 = vmatpush1.msra.mxu0 %v607
      %668 = vmatprep.subr.mxu0 0.0
      %669 = vmatpush1.msra.mxu0 %v608
      %670 = vmatprep.subr.mxu0 0.0
      %671 = vmatpush1.msra.mxu0 %v609
      %672 = vmatprep.subr.mxu0 0.0
      %673 = vmatpush1.msra.mxu0 %v610
      %674 = vmatprep.subr.mxu0 0.0
      %675 = vmatpush1.msra.mxu0 %v611
      %676 = vmatprep.mubr.f32.mxu0 %v345
      %677 = vmatmul.mubr.f32.gmra.mrb[0].mxu0 %v344
      %v678 = vpop.f32.mrb[0].mxu0
      %v679 = vadd.f32 0.0, %v678
      %v680 = vpop.f32.mrb[0].mxu0
      %681 = vmatprep.mubr.f32.mxu0 %v347
      %682 = vmatmul.mubr.f32.gmra.mrb[0].mxu0 %v346
      %v683 = vpop.f32.mrb[0].mxu0
      %v684 = vadd.f32 0.0, %v683
      %v685 = vpop.f32.mrb[0].mxu0
      %686 = vmatprep.mubr.f32.mxu0 %v349
      %687 = vmatmul.mubr.f32.gmra.mrb[0].mxu0 %v348
      %v688 = vpop.f32.mrb[0].mxu0
      %v689 = vadd.f32 0.0, %v688
      %v690 = vpop.f32.mrb[0].mxu0
      %691 = vmatprep.mubr.f32.mxu0 %v351
      %692 = vmatmul.mubr.f32.gmra.mrb[0].mxu0 %v350
      %v693 = vpop.f32.mrb[0].mxu0
      %v694 = vadd.f32 0.0, %v693
      %v695 = vpop.f32.mrb[0].mxu0
      %696 = vmatprep.mubr.f32.mxu0 %v353
      %697 = vmatmul.mubr.f32.gmra.mrb[0].mxu0 %v352
      %v698 = vpop.f32.mrb[0].mxu0
      %v699 = vadd.f32 0.0, %v698
      %v700 = vpop.f32.mrb[0].mxu0
      %701 = vmatprep.mubr.f32.mxu0 %v355
      %702 = vmatmul.mubr.f32.gmra.mrb[0].mxu0 %v354
      %v703 = vpop.f32.mrb[0].mxu0
      %v704 = vadd.f32 0.0, %v703
      %v705 = vpop.f32.mrb[0].mxu0
      %706 = vmatprep.mubr.f32.mxu0 %v357
      %707 = vmatmul.mubr.f32.gmra.mrb[0].mxu0 %v356
      %v708 = vpop.f32.mrb[0].mxu0
      %v709 = vadd.f32 0.0, %v708
      %v710 = vpop.f32.mrb[0].mxu0
      %711 = vmatprep.mubr.f32.mxu0 %v359
      %712 = vmatmul.mubr.f32.gmra.mrb[0].mxu0 %v358
      %v713 = vpop.f32.mrb[0].mxu0
      %v714 = vadd.f32 0.0, %v713
      %v715 = vpop.f32.mrb[0].mxu0
      %716 = vmatprep.mubr.f32.mxu0 %v361
      %717 = vmatmul.mubr.f32.gmra.mrb[0].mxu0 %v360
      %v718 = vpop.f32.mrb[0].mxu0
      %v719 = vadd.f32 0.0, %v718
      %v720 = vpop.f32.mrb[0].mxu0
      %721 = vmatprep.mubr.f32.mxu0 %v363
      %722 = vmatmul.mubr.f32.gmra.mrb[0].mxu0 %v362
      %v723 = vpop.f32.mrb[0].mxu0
      %v724 = vadd.f32 0.0, %v723
      %v725 = vpop.f32.mrb[0].mxu0
      %726 = vmatprep.mubr.f32.mxu0 %v365
      %727 = vmatmul.mubr.f32.gmra.mrb[0].mxu0 %v364
      %v728 = vpop.f32.mrb[0].mxu0
      %v729 = vadd.f32 0.0, %v728
      %v730 = vpop.f32.mrb[0].mxu0
      %731 = vmatprep.mubr.f32.mxu0 %v367
      %732 = vmatmul.mubr.f32.gmra.mrb[0].mxu0 %v366
      %v733 = vpop.f32.mrb[0].mxu0
      %v734 = vadd.f32 0.0, %v733
      %v735 = vpop.f32.mrb[0].mxu0
      %736 = vmatprep.mubr.f32.mxu0 %v369
      %737 = vmatmul.mubr.f32.gmra.mrb[0].mxu0 %v368
      %v738 = vpop.f32.mrb[0].mxu0
      %v739 = vadd.f32 0.0, %v738
      %v740 = vpop.f32.mrb[0].mxu0
      %741 = vmatprep.mubr.f32.mxu0 %v371
      %742 = vmatmul.mubr.f32.gmra.mrb[0].mxu0 %v370
      %v743 = vpop.f32.mrb[0].mxu0
      %v744 = vadd.f32 0.0, %v743
      %v745 = vpop.f32.mrb[0].mxu0
      %746 = vmatprep.mubr.f32.mxu0 %v373
      %747 = vmatmul.mubr.f32.gmra.mrb[0].mxu0 %v372
      %v748 = vpop.f32.mrb[0].mxu0
      %v749 = vadd.f32 0.0, %v748
      %v750 = vpop.f32.mrb[0].mxu0
      %751 = vmatprep.mubr.f32.mxu0 %v375
      %752 = vmatmul.mubr.f32.gmra.mrb[0].mxu0 %v374
      %v753 = vpop.f32.mrb[0].mxu0
      %v754 = vadd.f32 0.0, %v753
      %v755 = vpop.f32.mrb[0].mxu0
      %756 = vmatprep.mubr.f32.mxu0 %v377
      %757 = vmatmul.mubr.f32.gmra.mrb[0].mxu0 %v376
      %v758 = vpop.f32.mrb[0].mxu0
      %v759 = vadd.f32 0.0, %v758
      %v760 = vpop.f32.mrb[0].mxu0
      %761 = vmatprep.mubr.f32.mxu0 %v379
      %762 = vmatmul.mubr.f32.gmra.mrb[0].mxu0 %v378
      %v763 = vpop.f32.mrb[0].mxu0
      %v764 = vadd.f32 0.0, %v763
      %v765 = vpop.f32.mrb[0].mxu0
      %766 = vdwg.mxu0
      %767 = vmatprep.subr.mxu0 0.0
      %768 = vmatpush1.msra.mxu0 %v580
      %769 = vmatprep.subr.mxu0 0.0
      %770 = vmatpush1.msra.mxu0 %v581
      %771 = vmatprep.subr.mxu0 0.0
      %772 = vmatpush1.msra.mxu0 %v582
      %773 = vmatprep.subr.mxu0 0.0
      %774 = vmatpush1.msra.mxu0 %v583
      %775 = vmatprep.subr.mxu0 0.0
      %776 = vmatpush1.msra.mxu0 %v584
      %777 = vmatprep.subr.mxu0 0.0
      %778 = vmatpush1.msra.mxu0 %v585
      %779 = vmatprep.subr.mxu0 0.0
      %780 = vmatpush1.msra.mxu0 %v586
      %781 = vmatprep.subr.mxu0 0.0
      %782 = vmatpush1.msra.mxu0 %v587
      %783 = vmatprep.subr.mxu0 0.0
      %784 = vmatpush1.msra.mxu0 %v588
      %785 = vmatprep.subr.mxu0 0.0
      %786 = vmatpush1.msra.mxu0 %v589
      %787 = vmatprep.subr.mxu0 0.0
      %788 = vmatpush1.msra.mxu0 %v590
      %789 = vmatprep.subr.mxu0 0.0
      %790 = vmatpush1.msra.mxu0 %v591
      %791 = vmatprep.subr.mxu0 0.0
      %792 = vmatpush1.msra.mxu0 %v592
      %793 = vmatprep.subr.mxu0 0.0
      %794 = vmatpush1.msra.mxu0 %v593
      %795 = vmatprep.subr.mxu0 0.0
      %796 = vmatpush1.msra.mxu0 %v594
      %797 = vmatprep.subr.mxu0 0.0
      %798 = vmatpush1.msra.mxu0 %v595
      %799 = vmatprep.subr.mxu0 0.0
      %800 = vmatpush1.msra.mxu0 %v596
      %801 = vmatprep.subr.mxu0 0.0
      %802 = vmatpush1.msra.mxu0 %v597
      %803 = vmatprep.subr.mxu0 0.0
      %804 = vmatpush1.msra.mxu0 %v598
      %805 = vmatprep.subr.mxu0 0.0
      %806 = vmatpush1.msra.mxu0 %v599
      %807 = vmatprep.subr.mxu0 0.0
      %808 = vmatpush1.msra.mxu0 %v600
      %809 = vmatprep.subr.mxu0 0.0
      %810 = vmatpush1.msra.mxu0 %v601
      %811 = vmatprep.subr.mxu0 0.0
      %812 = vmatpush1.msra.mxu0 %v602
      %813 = vmatprep.subr.mxu0 0.0
      %814 = vmatpush1.msra.mxu0 %v603
      %815 = vmatprep.subr.mxu0 0.0
      %816 = vmatpush1.msra.mxu0 %v604
      %817 = vmatprep.subr.mxu0 0.0
      %818 = vmatpush1.msra.mxu0 %v605
      %819 = vmatprep.subr.mxu0 0.0
      %820 = vmatpush1.msra.mxu0 %v606
      %821 = vmatprep.subr.mxu0 0.0
      %822 = vmatpush1.msra.mxu0 %v607
      %823 = vmatprep.subr.mxu0 0.0
      %824 = vmatpush1.msra.mxu0 %v608
      %825 = vmatprep.subr.mxu0 0.0
      %826 = vmatpush1.msra.mxu0 %v609
      %827 = vmatprep.subr.mxu0 0.0
      %828 = vmatpush1.msra.mxu0 %v610
      %829 = vmatprep.subr.mxu0 0.0
      %830 = vmatpush1.msra.mxu0 %v611
      %831 = vmatprep.mubr.f32.mxu0 %v381
      %832 = vmatmul.mubr.f32.gmra.mrb[0].mxu0 %v380
      %v833 = vpop.f32.mrb[0].mxu0
      %v834 = vadd.f32 0.0, %v833
      %v835 = vpop.f32.mrb[0].mxu0
      %836 = vmatprep.mubr.f32.mxu0 %v383
      %837 = vmatmul.mubr.f32.gmra.mrb[0].mxu0 %v382
      %v838 = vpop.f32.mrb[0].mxu0
      %v839 = vadd.f32 0.0, %v838
      %v840 = vpop.f32.mrb[0].mxu0
      %841 = vmatprep.mubr.f32.mxu0 %v385
      %842 = vmatmul.mubr.f32.gmra.mrb[0].mxu0 %v384
      %v843 = vpop.f32.mrb[0].mxu0
      %v844 = vadd.f32 0.0, %v843
      %v845 = vpop.f32.mrb[0].mxu0
      %846 = vmatprep.mubr.f32.mxu0 %v387
      %847 = vmatmul.mubr.f32.gmra.mrb[0].mxu0 %v386
      %v848 = vpop.f32.mrb[0].mxu0
      %v849 = vadd.f32 0.0, %v848
      %v850 = vpop.f32.mrb[0].mxu0
      %851 = vmatprep.mubr.f32.mxu0 %v389
      %852 = vmatmul.mubr.f32.gmra.mrb[0].mxu0 %v388
      %v853 = vpop.f32.mrb[0].mxu0
      %v854 = vadd.f32 0.0, %v853
      %v855 = vpop.f32.mrb[0].mxu0
      %856 = vmatprep.mubr.f32.mxu0 %v391
      %857 = vmatmul.mubr.f32.gmra.mrb[0].mxu0 %v390
      %v858 = vpop.f32.mrb[0].mxu0
      %v859 = vadd.f32 0.0, %v858
      %v860 = vpop.f32.mrb[0].mxu0
      %861 = vmatprep.mubr.f32.mxu0 %v393
      %862 = vmatmul.mubr.f32.gmra.mrb[0].mxu0 %v392
      %v863 = vpop.f32.mrb[0].mxu0
      %v864 = vadd.f32 0.0, %v863
      %v865 = vpop.f32.mrb[0].mxu0
      %866 = vmatprep.mubr.f32.mxu0 %v395
      %867 = vmatmul.mubr.f32.gmra.mrb[0].mxu0 %v394
      %v868 = vpop.f32.mrb[0].mxu0
      %v869 = vadd.f32 0.0, %v868
      %v870 = vpop.f32.mrb[0].mxu0
      %871 = vmatprep.mubr.f32.mxu0 %v397
      %872 = vmatmul.mubr.f32.gmra.mrb[0].mxu0 %v396
      %v873 = vpop.f32.mrb[0].mxu0
      %v874 = vadd.f32 0.0, %v873
      %v875 = vpop.f32.mrb[0].mxu0
      %876 = vmatprep.mubr.f32.mxu0 %v399
      %877 = vmatmul.mubr.f32.gmra.mrb[0].mxu0 %v398
      %v878 = vpop.f32.mrb[0].mxu0
      %v879 = vadd.f32 0.0, %v878
      %v880 = vpop.f32.mrb[0].mxu0
      %881 = vmatprep.mubr.f32.mxu0 %v401
      %882 = vmatmul.mubr.f32.gmra.mrb[0].mxu0 %v400
      %v883 = vpop.f32.mrb[0].mxu0
      %v884 = vadd.f32 0.0, %v883
      %v885 = vpop.f32.mrb[0].mxu0
      %886 = vmatprep.mubr.f32.mxu0 %v403
      %887 = vmatmul.mubr.f32.gmra.mrb[0].mxu0 %v402
      %v888 = vpop.f32.mrb[0].mxu0
      %v889 = vadd.f32 0.0, %v888
      %v890 = vpop.f32.mrb[0].mxu0
      %891 = vmatprep.mubr.f32.mxu0 %v405
      %892 = vmatmul.mubr.f32.gmra.mrb[0].mxu0 %v404
      %v893 = vpop.f32.mrb[0].mxu0
      %v894 = vadd.f32 0.0, %v893
      %v895 = vpop.f32.mrb[0].mxu0
      %896 = vmatprep.mubr.f32.mxu0 %v407
      %897 = vmatmul.mubr.f32.gmra.mrb[0].mxu0 %v406
      %v898 = vpop.f32.mrb[0].mxu0
      %v899 = vadd.f32 0.0, %v898
      %v900 = vpop.f32.mrb[0].mxu0
      %901 = vmatprep.mubr.f32.mxu0 %v409
      %902 = vmatmul.mubr.f32.gmra.mrb[0].mxu0 %v408
      %v903 = vpop.f32.mrb[0].mxu0
      %v904 = vadd.f32 0.0, %v903
      %v905 = vpop.f32.mrb[0].mxu0
      %906 = vmatprep.mubr.f32.mxu0 %v411
      %907 = vmatmul.mubr.f32.gmra.mrb[0].mxu0 %v410
      %v908 = vpop.f32.mrb[0].mxu0
      %v909 = vadd.f32 0.0, %v908
      %v910 = vpop.f32.mrb[0].mxu0
      %911 = vmatprep.mubr.f32.mxu0 %v413
      %912 = vmatmul.mubr.f32.gmra.mrb[0].mxu0 %v412
      %v913 = vpop.f32.mrb[0].mxu0
      %v914 = vadd.f32 0.0, %v913
      %v915 = vpop.f32.mrb[0].mxu0
      %916 = vmatprep.mubr.f32.mxu0 %v415
      %917 = vmatmul.mubr.f32.gmra.mrb[0].mxu0 %v414
      %v918 = vpop.f32.mrb[0].mxu0
      %v919 = vadd.f32 0.0, %v918
      %v920 = vpop.f32.mrb[0].mxu0
      %921 = vdwg.mxu0
      %v922 = vmul.f32 %v679, %v544
      %v923 = vmul.f32 %v684, %v545
      %v924 = vmul.f32 %v689, %v546
      %v925 = vmul.f32 %v694, %v547
      %v926 = vmul.f32 %v699, %v548
      %v927 = vmul.f32 %v704, %v549
      %v928 = vmul.f32 %v709, %v550
      %v929 = vmul.f32 %v714, %v551
      %v930 = vmul.f32 %v719, %v552
      %v931 = vmul.f32 %v724, %v553
      %v932 = vmul.f32 %v729, %v554
      %v933 = vmul.f32 %v734, %v555
      %v934 = vmul.f32 %v739, %v556
      %v935 = vmul.f32 %v744, %v557
      %v936 = vmul.f32 %v749, %v558
      %v937 = vmul.f32 %v754, %v559
      %v938 = vmul.f32 %v759, %v560
      %v939 = vmul.f32 %v764, %v561
      %v940 = vmul.f32 %v834, %v562
      %v941 = vmul.f32 %v839, %v563
      %v942 = vmul.f32 %v844, %v564
      %v943 = vmul.f32 %v849, %v565
      %v944 = vmul.f32 %v854, %v566
      %v945 = vmul.f32 %v859, %v567
      %v946 = vmul.f32 %v864, %v568
      %v947 = vmul.f32 %v869, %v569
      %v948 = vmul.f32 %v874, %v570
      %v949 = vmul.f32 %v879, %v571
      %v950 = vmul.f32 %v884, %v572
      %v951 = vmul.f32 %v889, %v573
      %v952 = vmul.f32 %v894, %v574
      %v953 = vmul.f32 %v899, %v575
      %v954 = vmul.f32 %v904, %v576
      %v955 = vmul.f32 %v909, %v577
      %v956 = vmul.f32 %v914, %v578
      %v957 = vmul.f32 %v919, %v579
      %v958 = vsub.f32 %v922, %v940
      %v959 = vsub.f32 %v923, %v941
      %v960 = vsub.f32 %v924, %v942
      %v961 = vsub.f32 %v925, %v943
      %v962 = vsub.f32 %v926, %v944
      %v963 = vsub.f32 %v927, %v945
      %v964 = vsub.f32 %v928, %v946
      %v965 = vsub.f32 %v929, %v947
      %v966 = vsub.f32 %v930, %v948
      %v967 = vsub.f32 %v931, %v949
      %v968 = vsub.f32 %v932, %v950
      %v969 = vsub.f32 %v933, %v951
      %v970 = vsub.f32 %v934, %v952
      %v971 = vsub.f32 %v935, %v953
      %v972 = vsub.f32 %v936, %v954
      %v973 = vsub.f32 %v937, %v955
      %v974 = vsub.f32 %v938, %v956
      %v975 = vsub.f32 %v939, %v957
      %v976 = vmul.f32 %v679, %v562
      %v977 = vmul.f32 %v684, %v563
      %v978 = vmul.f32 %v689, %v564
      %v979 = vmul.f32 %v694, %v565
      %v980 = vmul.f32 %v699, %v566
      %v981 = vmul.f32 %v704, %v567
      %v982 = vmul.f32 %v709, %v568
      %v983 = vmul.f32 %v714, %v569
      %v984 = vmul.f32 %v719, %v570
      %v985 = vmul.f32 %v724, %v571
      %v986 = vmul.f32 %v729, %v572
      %v987 = vmul.f32 %v734, %v573
      %v988 = vmul.f32 %v739, %v574
      %v989 = vmul.f32 %v744, %v575
      %v990 = vmul.f32 %v749, %v576
      %v991 = vmul.f32 %v754, %v577
      %v992 = vmul.f32 %v759, %v578
      %v993 = vmul.f32 %v764, %v579
      %v994 = vmul.f32 %v834, %v544
      %v995 = vmul.f32 %v839, %v545
      %v996 = vmul.f32 %v844, %v546
      %v997 = vmul.f32 %v849, %v547
      %v998 = vmul.f32 %v854, %v548
      %v999 = vmul.f32 %v859, %v549
      %v1000 = vmul.f32 %v864, %v550
      %v1001 = vmul.f32 %v869, %v551
      %v1002 = vmul.f32 %v874, %v552
      %v1003 = vmul.f32 %v879, %v553
      %v1004 = vmul.f32 %v884, %v554
      %v1005 = vmul.f32 %v889, %v555
      %v1006 = vmul.f32 %v894, %v556
      %v1007 = vmul.f32 %v899, %v557
      %v1008 = vmul.f32 %v904, %v558
      %v1009 = vmul.f32 %v909, %v559
      %v1010 = vmul.f32 %v914, %v560
      %v1011 = vmul.f32 %v919, %v561
      %v1012 = vadd.f32 %v976, %v994
      %v1013 = vadd.f32 %v977, %v995
      %v1014 = vadd.f32 %v978, %v996
      %v1015 = vadd.f32 %v979, %v997
      %v1016 = vadd.f32 %v980, %v998
      %v1017 = vadd.f32 %v981, %v999
      %v1018 = vadd.f32 %v982, %v1000
      %v1019 = vadd.f32 %v983, %v1001
      %v1020 = vadd.f32 %v984, %v1002
      %v1021 = vadd.f32 %v985, %v1003
      %v1022 = vadd.f32 %v986, %v1004
      %v1023 = vadd.f32 %v987, %v1005
      %v1024 = vadd.f32 %v988, %v1006
      %v1025 = vadd.f32 %v989, %v1007
      %v1026 = vadd.f32 %v990, %v1008
      %v1027 = vadd.f32 %v991, %v1009
      %v1028 = vadd.f32 %v992, %v1010
      %v1029 = vadd.f32 %v993, %v1011
      %vm1030 = vcmask 130048
      %v1032 = vsel %vm1030, %v481, 0
      %v1035 = vsel %vm1030, %v483, 0
      %v1038 = vsel %vm1030, %v485, 0
      %v1041 = vsel %vm1030, %v487, 0
      %v1044 = vsel %vm1030, %v489, 0
      %v1047 = vsel %vm1030, %v491, 0
      %v1050 = vsel %vm1030, %v493, 0
      %v1053 = vsel %vm1030, %v495, 0
      %v1056 = vsel %vm1030, %v497, 0
      %v1059 = vsel %vm1030, %v499, 0
      %v1062 = vsel %vm1030, %v501, 0
      %v1065 = vsel %vm1030, %v503, 0
      %v1068 = vsel %vm1030, %v505, 0
      %v1071 = vsel %vm1030, %v507, 0
      %v1074 = vsel %vm1030, %v509, 0
      %v1077 = vsel %vm1030, %v511, 0
      %v1080 = vsel %vm1030, %v513, 0
      %v1083 = vsel %vm1030, %v515, 0
      %v1086 = vsel %vm1030, %v517, 0
      %v1089 = vsel %vm1030, %v519, 0
      %v1092 = vsel %vm1030, %v521, 0
      %v1095 = vsel %vm1030, %v523, 0
      %v1098 = vsel %vm1030, %v525, 0
      %v1101 = vsel %vm1030, %v527, 0
      %v1104 = vsel %vm1030, %v529, 0
      %v1107 = vsel %vm1030, %v531, 0
      %v1110 = vsel %vm1030, %v533, 0
      %v1113 = vsel %vm1030, %v535, 0
      %v1116 = vsel %vm1030, %v537, 0
      %v1119 = vsel %vm1030, %v539, 0
      %v1122 = vsel %vm1030, %v541, 0
      %v1125 = vsel %vm1030, %v543, 0
      %1127 = vmatprep.subr.mxu0 0.0
      %1128 = vmatpush1.msra.mxu0 %v1012
      %1129 = vmatprep.subr.mxu0 0.0
      %1130 = vmatpush1.msra.mxu0 %v1013
      %1131 = vmatprep.subr.mxu0 0.0
      %1132 = vmatpush1.msra.mxu0 %v1014
      %1133 = vmatprep.subr.mxu0 0.0
      %1134 = vmatpush1.msra.mxu0 %v1015
      %1135 = vmatprep.subr.mxu0 0.0
      %1136 = vmatpush1.msra.mxu0 %v1016
      %1137 = vmatprep.subr.mxu0 0.0
      %1138 = vmatpush1.msra.mxu0 %v1017
      %1139 = vmatprep.subr.mxu0 0.0
      %1140 = vmatpush1.msra.mxu0 %v1018
      %1141 = vmatprep.subr.mxu0 0.0
      %1142 = vmatpush1.msra.mxu0 %v1019
      %1143 = vmatprep.subr.mxu0 0.0
      %1144 = vmatpush1.msra.mxu0 %v1020
      %1145 = vmatprep.subr.mxu0 0.0
      %1146 = vmatpush1.msra.mxu0 %v1021
      %1147 = vmatprep.subr.mxu0 0.0
      %1148 = vmatpush1.msra.mxu0 %v1022
      %1149 = vmatprep.subr.mxu0 0.0
      %1150 = vmatpush1.msra.mxu0 %v1023
      %1151 = vmatprep.subr.mxu0 0.0
      %1152 = vmatpush1.msra.mxu0 %v1024
      %1153 = vmatprep.subr.mxu0 0.0
      %1154 = vmatpush1.msra.mxu0 %v1025
      %1155 = vmatprep.subr.mxu0 0.0
      %1156 = vmatpush1.msra.mxu0 %v1026
      %1157 = vmatprep.subr.mxu0 0.0
      %1158 = vmatpush1.msra.mxu0 %v1027
      %1159 = vmatprep.subr.mxu0 0.0
      %1160 = vmatpush1.msra.mxu0 %v1028
      %1161 = vmatprep.subr.mxu0 0.0
      %1162 = vmatpush1.msra.mxu0 %v1029
      %1163 = vmatprep.subr.mxu0 0.0
      %1164 = vmatpush1.msra.mxu0 0.0
      %1165 = vmatprep.subr.mxu0 0.0
      %1166 = vmatpush1.msra.mxu0 0.0
      %1167 = vmatprep.subr.mxu0 0.0
      %1168 = vmatpush1.msra.mxu0 0.0
      %1169 = vmatprep.subr.mxu0 0.0
      %1170 = vmatpush1.msra.mxu0 0.0
      %1171 = vmatprep.subr.mxu0 0.0
      %1172 = vmatpush1.msra.mxu0 0.0
      %1173 = vmatprep.subr.mxu0 0.0
      %1174 = vmatpush1.msra.mxu0 0.0
      %1175 = vmatprep.subr.mxu0 0.0
      %1176 = vmatpush1.msra.mxu0 0.0
      %1177 = vmatprep.subr.mxu0 0.0
      %1178 = vmatpush1.msra.mxu0 0.0
      %1179 = vmatprep.subr.mxu0 0.0
      %1180 = vmatpush1.msra.mxu0 0.0
      %1181 = vmatprep.subr.mxu0 0.0
      %1182 = vmatpush1.msra.mxu0 0.0
      %1183 = vmatprep.subr.mxu0 0.0
      %1184 = vmatpush1.msra.mxu0 0.0
      %1185 = vmatprep.subr.mxu0 0.0
      %1186 = vmatpush1.msra.mxu0 0.0
      %1187 = vmatprep.subr.mxu0 0.0
      %1188 = vmatpush1.msra.mxu0 0.0
      %1189 = vmatprep.subr.mxu0 0.0
      %1190 = vmatpush1.msra.mxu0 0.0
      %1191 = vmatprep.mubr.f32.mxu0 %v1032
      %1192 = vmatmul.mubr.f32.gmra.mrb[0].mxu0 %v480
      %v1193 = vpop.f32.mrb[0].mxu0
      %v1194 = vadd.f32 0.0, %v1193
      %v1195 = vpop.f32.mrb[0].mxu0
      %1196 = vmatprep.mubr.f32.mxu0 %v1035
      %1197 = vmatmul.mubr.f32.gmra.mrb[0].mxu0 %v482
      %v1198 = vpop.f32.mrb[0].mxu0
      %v1199 = vadd.f32 0.0, %v1198
      %v1200 = vpop.f32.mrb[0].mxu0
      %1201 = vmatprep.mubr.f32.mxu0 %v1038
      %1202 = vmatmul.mubr.f32.gmra.mrb[0].mxu0 %v484
      %v1203 = vpop.f32.mrb[0].mxu0
      %v1204 = vadd.f32 0.0, %v1203
      %v1205 = vpop.f32.mrb[0].mxu0
      %1206 = vmatprep.mubr.f32.mxu0 %v1041
      %1207 = vmatmul.mubr.f32.gmra.mrb[0].mxu0 %v486
      %v1208 = vpop.f32.mrb[0].mxu0
      %v1209 = vadd.f32 0.0, %v1208
      %v1210 = vpop.f32.mrb[0].mxu0
      %1211 = vmatprep.mubr.f32.mxu0 %v1044
      %1212 = vmatmul.mubr.f32.gmra.mrb[0].mxu0 %v488
      %v1213 = vpop.f32.mrb[0].mxu0
      %v1214 = vadd.f32 0.0, %v1213
      %v1215 = vpop.f32.mrb[0].mxu0
      %1216 = vmatprep.mubr.f32.mxu0 %v1047
      %1217 = vmatmul.mubr.f32.gmra.mrb[0].mxu0 %v490
      %v1218 = vpop.f32.mrb[0].mxu0
      %v1219 = vadd.f32 0.0, %v1218
      %v1220 = vpop.f32.mrb[0].mxu0
      %1221 = vmatprep.mubr.f32.mxu0 %v1050
      %1222 = vmatmul.mubr.f32.gmra.mrb[0].mxu0 %v492
      %v1223 = vpop.f32.mrb[0].mxu0
      %v1224 = vadd.f32 0.0, %v1223
      %v1225 = vpop.f32.mrb[0].mxu0
      %1226 = vmatprep.mubr.f32.mxu0 %v1053
      %1227 = vmatmul.mubr.f32.gmra.mrb[0].mxu0 %v494
      %v1228 = vpop.f32.mrb[0].mxu0
      %v1229 = vadd.f32 0.0, %v1228
      %v1230 = vpop.f32.mrb[0].mxu0
      %1231 = vmatprep.mubr.f32.mxu0 %v1056
      %1232 = vmatmul.mubr.f32.gmra.mrb[0].mxu0 %v496
      %v1233 = vpop.f32.mrb[0].mxu0
      %v1234 = vadd.f32 0.0, %v1233
      %v1235 = vpop.f32.mrb[0].mxu0
      %1236 = vmatprep.mubr.f32.mxu0 %v1059
      %1237 = vmatmul.mubr.f32.gmra.mrb[0].mxu0 %v498
      %v1238 = vpop.f32.mrb[0].mxu0
      %v1239 = vadd.f32 0.0, %v1238
      %v1240 = vpop.f32.mrb[0].mxu0
      %1241 = vmatprep.mubr.f32.mxu0 %v1062
      %1242 = vmatmul.mubr.f32.gmra.mrb[0].mxu0 %v500
      %v1243 = vpop.f32.mrb[0].mxu0
      %v1244 = vadd.f32 0.0, %v1243
      %v1245 = vpop.f32.mrb[0].mxu0
      %1246 = vmatprep.mubr.f32.mxu0 %v1065
      %1247 = vmatmul.mubr.f32.gmra.mrb[0].mxu0 %v502
      %v1248 = vpop.f32.mrb[0].mxu0
      %v1249 = vadd.f32 0.0, %v1248
      %v1250 = vpop.f32.mrb[0].mxu0
      %1251 = vmatprep.mubr.f32.mxu0 %v1068
      %1252 = vmatmul.mubr.f32.gmra.mrb[0].mxu0 %v504
      %v1253 = vpop.f32.mrb[0].mxu0
      %v1254 = vadd.f32 0.0, %v1253
      %v1255 = vpop.f32.mrb[0].mxu0
      %1256 = vmatprep.mubr.f32.mxu0 %v1071
      %1257 = vmatmul.mubr.f32.gmra.mrb[0].mxu0 %v506
      %v1258 = vpop.f32.mrb[0].mxu0
      %v1259 = vadd.f32 0.0, %v1258
      %v1260 = vpop.f32.mrb[0].mxu0
      %1261 = vmatprep.mubr.f32.mxu0 %v1074
      %1262 = vmatmul.mubr.f32.gmra.mrb[0].mxu0 %v508
      %v1263 = vpop.f32.mrb[0].mxu0
      %v1264 = vadd.f32 0.0, %v1263
      %v1265 = vpop.f32.mrb[0].mxu0
      %1266 = vmatprep.mubr.f32.mxu0 %v1077
      %1267 = vmatmul.mubr.f32.gmra.mrb[0].mxu0 %v510
      %v1268 = vpop.f32.mrb[0].mxu0
      %v1269 = vadd.f32 0.0, %v1268
      %v1270 = vpop.f32.mrb[0].mxu0
      %1271 = vmatprep.mubr.f32.mxu0 %v1080
      %1272 = vmatmul.mubr.f32.gmra.mrb[0].mxu0 %v512
      %v1273 = vpop.f32.mrb[0].mxu0
      %v1274 = vadd.f32 0.0, %v1273
      %v1275 = vpop.f32.mrb[0].mxu0
      %1276 = vmatprep.mubr.f32.mxu0 %v1083
      %1277 = vmatmul.mubr.f32.gmra.mrb[0].mxu0 %v514
      %v1278 = vpop.f32.mrb[0].mxu0
      %v1279 = vadd.f32 0.0, %v1278
      %v1280 = vpop.f32.mrb[0].mxu0
      %1281 = vmatprep.mubr.f32.mxu0 %v1086
      %1282 = vmatmul.mubr.f32.gmra.mrb[0].mxu0 %v516
      %v1283 = vpop.f32.mrb[0].mxu0
      %v1284 = vadd.f32 0.0, %v1283
      %v1285 = vpop.f32.mrb[0].mxu0
      %1286 = vmatprep.mubr.f32.mxu0 %v1089
      %1287 = vmatmul.mubr.f32.gmra.mrb[0].mxu0 %v518
      %v1288 = vpop.f32.mrb[0].mxu0
      %v1289 = vadd.f32 0.0, %v1288
      %v1290 = vpop.f32.mrb[0].mxu0
      %1291 = vmatprep.mubr.f32.mxu0 %v1092
      %1292 = vmatmul.mubr.f32.gmra.mrb[0].mxu0 %v520
      %v1293 = vpop.f32.mrb[0].mxu0
      %v1294 = vadd.f32 0.0, %v1293
      %v1295 = vpop.f32.mrb[0].mxu0
      %1296 = vmatprep.mubr.f32.mxu0 %v1095
      %1297 = vmatmul.mubr.f32.gmra.mrb[0].mxu0 %v522
      %v1298 = vpop.f32.mrb[0].mxu0
      %v1299 = vadd.f32 0.0, %v1298
      %v1300 = vpop.f32.mrb[0].mxu0
      %1301 = vmatprep.mubr.f32.mxu0 %v1098
      %1302 = vmatmul.mubr.f32.gmra.mrb[0].mxu0 %v524
      %v1303 = vpop.f32.mrb[0].mxu0
      %v1304 = vadd.f32 0.0, %v1303
      %v1305 = vpop.f32.mrb[0].mxu0
      %1306 = vmatprep.mubr.f32.mxu0 %v1101
      %1307 = vmatmul.mubr.f32.gmra.mrb[0].mxu0 %v526
      %v1308 = vpop.f32.mrb[0].mxu0
      %v1309 = vadd.f32 0.0, %v1308
      %v1310 = vpop.f32.mrb[0].mxu0
      %1311 = vmatprep.mubr.f32.mxu0 %v1104
      %1312 = vmatmul.mubr.f32.gmra.mrb[0].mxu0 %v528
      %v1313 = vpop.f32.mrb[0].mxu0
      %v1314 = vadd.f32 0.0, %v1313
      %v1315 = vpop.f32.mrb[0].mxu0
      %1316 = vmatprep.mubr.f32.mxu0 %v1107
      %1317 = vmatmul.mubr.f32.gmra.mrb[0].mxu0 %v530
      %v1318 = vpop.f32.mrb[0].mxu0
      %v1319 = vadd.f32 0.0, %v1318
      %v1320 = vpop.f32.mrb[0].mxu0
      %1321 = vmatprep.mubr.f32.mxu0 %v1110
      %1322 = vmatmul.mubr.f32.gmra.mrb[0].mxu0 %v532
      %v1323 = vpop.f32.mrb[0].mxu0
      %v1324 = vadd.f32 0.0, %v1323
      %v1325 = vpop.f32.mrb[0].mxu0
      %1326 = vmatprep.mubr.f32.mxu0 %v1113
      %1327 = vmatmul.mubr.f32.gmra.mrb[0].mxu0 %v534
      %v1328 = vpop.f32.mrb[0].mxu0
      %v1329 = vadd.f32 0.0, %v1328
      %v1330 = vpop.f32.mrb[0].mxu0
      %1331 = vmatprep.mubr.f32.mxu0 %v1116
      %1332 = vmatmul.mubr.f32.gmra.mrb[0].mxu0 %v536
      %v1333 = vpop.f32.mrb[0].mxu0
      %v1334 = vadd.f32 0.0, %v1333
      %v1335 = vpop.f32.mrb[0].mxu0
      %1336 = vmatprep.mubr.f32.mxu0 %v1119
      %1337 = vmatmul.mubr.f32.gmra.mrb[0].mxu0 %v538
      %v1338 = vpop.f32.mrb[0].mxu0
      %v1339 = vadd.f32 0.0, %v1338
      %v1340 = vpop.f32.mrb[0].mxu0
      %1341 = vmatprep.mubr.f32.mxu0 %v1122
      %1342 = vmatmul.mubr.f32.gmra.mrb[0].mxu0 %v540
      %v1343 = vpop.f32.mrb[0].mxu0
      %v1344 = vadd.f32 0.0, %v1343
      %v1345 = vpop.f32.mrb[0].mxu0
      %1346 = vmatprep.mubr.f32.mxu0 %v1125
      %1347 = vmatmul.mubr.f32.gmra.mrb[0].mxu0 %v542
      %v1348 = vpop.f32.mrb[0].mxu0
      %v1349 = vadd.f32 0.0, %v1348
      %v1350 = vpop.f32.mrb[0].mxu0
      %1351 = vdwg.mxu0
      %v1353 = vsel %vm1030, %v417, 0
      %v1356 = vsel %vm1030, %v419, 0
      %v1359 = vsel %vm1030, %v421, 0
      %v1362 = vsel %vm1030, %v423, 0
      %v1365 = vsel %vm1030, %v425, 0
      %v1368 = vsel %vm1030, %v427, 0
      %v1371 = vsel %vm1030, %v429, 0
      %v1374 = vsel %vm1030, %v431, 0
      %v1377 = vsel %vm1030, %v433, 0
      %v1380 = vsel %vm1030, %v435, 0
      %v1383 = vsel %vm1030, %v437, 0
      %v1386 = vsel %vm1030, %v439, 0
      %v1389 = vsel %vm1030, %v441, 0
      %v1392 = vsel %vm1030, %v443, 0
      %v1395 = vsel %vm1030, %v445, 0
      %v1398 = vsel %vm1030, %v447, 0
      %v1401 = vsel %vm1030, %v449, 0
      %v1404 = vsel %vm1030, %v451, 0
      %v1407 = vsel %vm1030, %v453, 0
      %v1410 = vsel %vm1030, %v455, 0
      %v1413 = vsel %vm1030, %v457, 0
      %v1416 = vsel %vm1030, %v459, 0
      %v1419 = vsel %vm1030, %v461, 0
      %v1422 = vsel %vm1030, %v463, 0
      %v1425 = vsel %vm1030, %v465, 0
      %v1428 = vsel %vm1030, %v467, 0
      %v1431 = vsel %vm1030, %v469, 0
      %v1434 = vsel %vm1030, %v471, 0
      %v1437 = vsel %vm1030, %v473, 0
      %v1440 = vsel %vm1030, %v475, 0
      %v1443 = vsel %vm1030, %v477, 0
      %v1446 = vsel %vm1030, %v479, 0
      %1448 = vmatprep.subr.mxu0 0.0
      %1449 = vmatpush1.msra.mxu0 %v958
      %1450 = vmatprep.subr.mxu0 0.0
      %1451 = vmatpush1.msra.mxu0 %v959
      %1452 = vmatprep.subr.mxu0 0.0
      %1453 = vmatpush1.msra.mxu0 %v960
      %1454 = vmatprep.subr.mxu0 0.0
      %1455 = vmatpush1.msra.mxu0 %v961
      %1456 = vmatprep.subr.mxu0 0.0
      %1457 = vmatpush1.msra.mxu0 %v962
      %1458 = vmatprep.subr.mxu0 0.0
      %1459 = vmatpush1.msra.mxu0 %v963
      %1460 = vmatprep.subr.mxu0 0.0
      %1461 = vmatpush1.msra.mxu0 %v964
      %1462 = vmatprep.subr.mxu0 0.0
      %1463 = vmatpush1.msra.mxu0 %v965
      %1464 = vmatprep.subr.mxu0 0.0
      %1465 = vmatpush1.msra.mxu0 %v966
      %1466 = vmatprep.subr.mxu0 0.0
      %1467 = vmatpush1.msra.mxu0 %v967
      %1468 = vmatprep.subr.mxu0 0.0
      %1469 = vmatpush1.msra.mxu0 %v968
      %1470 = vmatprep.subr.mxu0 0.0
      %1471 = vmatpush1.msra.mxu0 %v969
      %1472 = vmatprep.subr.mxu0 0.0
      %1473 = vmatpush1.msra.mxu0 %v970
      %1474 = vmatprep.subr.mxu0 0.0
      %1475 = vmatpush1.msra.mxu0 %v971
      %1476 = vmatprep.subr.mxu0 0.0
      %1477 = vmatpush1.msra.mxu0 %v972
      %1478 = vmatprep.subr.mxu0 0.0
      %1479 = vmatpush1.msra.mxu0 %v973
      %1480 = vmatprep.subr.mxu0 0.0
      %1481 = vmatpush1.msra.mxu0 %v974
      %1482 = vmatprep.subr.mxu0 0.0
      %1483 = vmatpush1.msra.mxu0 %v975
      %1484 = vmatprep.subr.mxu0 0.0
      %1485 = vmatpush1.msra.mxu0 0.0
      %1486 = vmatprep.subr.mxu0 0.0
      %1487 = vmatpush1.msra.mxu0 0.0
      %1488 = vmatprep.subr.mxu0 0.0
      %1489 = vmatpush1.msra.mxu0 0.0
      %1490 = vmatprep.subr.mxu0 0.0
      %1491 = vmatpush1.msra.mxu0 0.0
      %1492 = vmatprep.subr.mxu0 0.0
      %1493 = vmatpush1.msra.mxu0 0.0
      %1494 = vmatprep.subr.mxu0 0.0
      %1495 = vmatpush1.msra.mxu0 0.0
      %1496 = vmatprep.subr.mxu0 0.0
      %1497 = vmatpush1.msra.mxu0 0.0
      %1498 = vmatprep.subr.mxu0 0.0
      %1499 = vmatpush1.msra.mxu0 0.0
      %1500 = vmatprep.subr.mxu0 0.0
      %1501 = vmatpush1.msra.mxu0 0.0
      %1502 = vmatprep.subr.mxu0 0.0
      %1503 = vmatpush1.msra.mxu0 0.0
      %1504 = vmatprep.subr.mxu0 0.0
      %1505 = vmatpush1.msra.mxu0 0.0
      %1506 = vmatprep.subr.mxu0 0.0
      %1507 = vmatpush1.msra.mxu0 0.0
      %1508 = vmatprep.subr.mxu0 0.0
      %1509 = vmatpush1.msra.mxu0 0.0
      %1510 = vmatprep.subr.mxu0 0.0
      %1511 = vmatpush1.msra.mxu0 0.0
      %1512 = vmatprep.mubr.f32.mxu0 %v1353
      %1513 = vmatmul.mubr.f32.gmra.mrb[0].mxu0 %v416
      %v1514 = vpop.f32.mrb[0].mxu0
      %v1515 = vadd.f32 %v1194, %v1514
      %v1516 = vpop.f32.mrb[0].mxu0
      %1517 = vmatprep.mubr.f32.mxu0 %v1356
      %1518 = vmatmul.mubr.f32.gmra.mrb[0].mxu0 %v418
      %v1519 = vpop.f32.mrb[0].mxu0
      %v1520 = vadd.f32 %v1199, %v1519
      %v1521 = vpop.f32.mrb[0].mxu0
      %1522 = vmatprep.mubr.f32.mxu0 %v1359
      %1523 = vmatmul.mubr.f32.gmra.mrb[0].mxu0 %v420
      %v1524 = vpop.f32.mrb[0].mxu0
      %v1525 = vadd.f32 %v1204, %v1524
      %v1526 = vpop.f32.mrb[0].mxu0
      %1527 = vmatprep.mubr.f32.mxu0 %v1362
      %1528 = vmatmul.mubr.f32.gmra.mrb[0].mxu0 %v422
      %v1529 = vpop.f32.mrb[0].mxu0
      %v1530 = vadd.f32 %v1209, %v1529
      %v1531 = vpop.f32.mrb[0].mxu0
      %1532 = vmatprep.mubr.f32.mxu0 %v1365
      %1533 = vmatmul.mubr.f32.gmra.mrb[0].mxu0 %v424
      %v1534 = vpop.f32.mrb[0].mxu0
      %v1535 = vadd.f32 %v1214, %v1534
      %v1536 = vpop.f32.mrb[0].mxu0
      %1537 = vmatprep.mubr.f32.mxu0 %v1368
      %1538 = vmatmul.mubr.f32.gmra.mrb[0].mxu0 %v426
      %v1539 = vpop.f32.mrb[0].mxu0
      %v1540 = vadd.f32 %v1219, %v1539
      %v1541 = vpop.f32.mrb[0].mxu0
      %1542 = vmatprep.mubr.f32.mxu0 %v1371
      %1543 = vmatmul.mubr.f32.gmra.mrb[0].mxu0 %v428
      %v1544 = vpop.f32.mrb[0].mxu0
      %v1545 = vadd.f32 %v1224, %v1544
      %v1546 = vpop.f32.mrb[0].mxu0
      %1547 = vmatprep.mubr.f32.mxu0 %v1374
      %1548 = vmatmul.mubr.f32.gmra.mrb[0].mxu0 %v430
      %v1549 = vpop.f32.mrb[0].mxu0
      %v1550 = vadd.f32 %v1229, %v1549
      %v1551 = vpop.f32.mrb[0].mxu0
      %1552 = vmatprep.mubr.f32.mxu0 %v1377
      %1553 = vmatmul.mubr.f32.gmra.mrb[0].mxu0 %v432
      %v1554 = vpop.f32.mrb[0].mxu0
      %v1555 = vadd.f32 %v1234, %v1554
      %v1556 = vpop.f32.mrb[0].mxu0
      %1557 = vmatprep.mubr.f32.mxu0 %v1380
      %1558 = vmatmul.mubr.f32.gmra.mrb[0].mxu0 %v434
      %v1559 = vpop.f32.mrb[0].mxu0
      %v1560 = vadd.f32 %v1239, %v1559
      %v1561 = vpop.f32.mrb[0].mxu0
      %1562 = vmatprep.mubr.f32.mxu0 %v1383
      %1563 = vmatmul.mubr.f32.gmra.mrb[0].mxu0 %v436
      %v1564 = vpop.f32.mrb[0].mxu0
      %v1565 = vadd.f32 %v1244, %v1564
      %v1566 = vpop.f32.mrb[0].mxu0
      %1567 = vmatprep.mubr.f32.mxu0 %v1386
      %1568 = vmatmul.mubr.f32.gmra.mrb[0].mxu0 %v438
      %v1569 = vpop.f32.mrb[0].mxu0
      %v1570 = vadd.f32 %v1249, %v1569
      %v1571 = vpop.f32.mrb[0].mxu0
      %1572 = vmatprep.mubr.f32.mxu0 %v1389
      %1573 = vmatmul.mubr.f32.gmra.mrb[0].mxu0 %v440
      %v1574 = vpop.f32.mrb[0].mxu0
      %v1575 = vadd.f32 %v1254, %v1574
      %v1576 = vpop.f32.mrb[0].mxu0
      %1577 = vmatprep.mubr.f32.mxu0 %v1392
      %1578 = vmatmul.mubr.f32.gmra.mrb[0].mxu0 %v442
      %v1579 = vpop.f32.mrb[0].mxu0
      %v1580 = vadd.f32 %v1259, %v1579
      %v1581 = vpop.f32.mrb[0].mxu0
      %1582 = vmatprep.mubr.f32.mxu0 %v1395
      %1583 = vmatmul.mubr.f32.gmra.mrb[0].mxu0 %v444
      %v1584 = vpop.f32.mrb[0].mxu0
      %v1585 = vadd.f32 %v1264, %v1584
      %v1586 = vpop.f32.mrb[0].mxu0
      %1587 = vmatprep.mubr.f32.mxu0 %v1398
      %1588 = vmatmul.mubr.f32.gmra.mrb[0].mxu0 %v446
      %v1589 = vpop.f32.mrb[0].mxu0
      %v1590 = vadd.f32 %v1269, %v1589
      %v1591 = vpop.f32.mrb[0].mxu0
      %1592 = vmatprep.mubr.f32.mxu0 %v1401
      %1593 = vmatmul.mubr.f32.gmra.mrb[0].mxu0 %v448
      %v1594 = vpop.f32.mrb[0].mxu0
      %v1595 = vadd.f32 %v1274, %v1594
      %v1596 = vpop.f32.mrb[0].mxu0
      %1597 = vmatprep.mubr.f32.mxu0 %v1404
      %1598 = vmatmul.mubr.f32.gmra.mrb[0].mxu0 %v450
      %v1599 = vpop.f32.mrb[0].mxu0
      %v1600 = vadd.f32 %v1279, %v1599
      %v1601 = vpop.f32.mrb[0].mxu0
      %1602 = vmatprep.mubr.f32.mxu0 %v1407
      %1603 = vmatmul.mubr.f32.gmra.mrb[0].mxu0 %v452
      %v1604 = vpop.f32.mrb[0].mxu0
      %v1605 = vadd.f32 %v1284, %v1604
      %v1606 = vpop.f32.mrb[0].mxu0
      %1607 = vmatprep.mubr.f32.mxu0 %v1410
      %1608 = vmatmul.mubr.f32.gmra.mrb[0].mxu0 %v454
      %v1609 = vpop.f32.mrb[0].mxu0
      %v1610 = vadd.f32 %v1289, %v1609
      %v1611 = vpop.f32.mrb[0].mxu0
      %1612 = vmatprep.mubr.f32.mxu0 %v1413
      %1613 = vmatmul.mubr.f32.gmra.mrb[0].mxu0 %v456
      %v1614 = vpop.f32.mrb[0].mxu0
      %v1615 = vadd.f32 %v1294, %v1614
      %v1616 = vpop.f32.mrb[0].mxu0
      %1617 = vmatprep.mubr.f32.mxu0 %v1416
      %1618 = vmatmul.mubr.f32.gmra.mrb[0].mxu0 %v458
      %v1619 = vpop.f32.mrb[0].mxu0
      %v1620 = vadd.f32 %v1299, %v1619
      %v1621 = vpop.f32.mrb[0].mxu0
      %1622 = vmatprep.mubr.f32.mxu0 %v1419
      %1623 = vmatmul.mubr.f32.gmra.mrb[0].mxu0 %v460
      %v1624 = vpop.f32.mrb[0].mxu0
      %v1625 = vadd.f32 %v1304, %v1624
      %v1626 = vpop.f32.mrb[0].mxu0
      %1627 = vmatprep.mubr.f32.mxu0 %v1422
      %1628 = vmatmul.mubr.f32.gmra.mrb[0].mxu0 %v462
      %v1629 = vpop.f32.mrb[0].mxu0
      %v1630 = vadd.f32 %v1309, %v1629
      %v1631 = vpop.f32.mrb[0].mxu0
      %1632 = vmatprep.mubr.f32.mxu0 %v1425
      %1633 = vmatmul.mubr.f32.gmra.mrb[0].mxu0 %v464
      %v1634 = vpop.f32.mrb[0].mxu0
      %v1635 = vadd.f32 %v1314, %v1634
      %v1636 = vpop.f32.mrb[0].mxu0
      %1637 = vmatprep.mubr.f32.mxu0 %v1428
      %1638 = vmatmul.mubr.f32.gmra.mrb[0].mxu0 %v466
      %v1639 = vpop.f32.mrb[0].mxu0
      %v1640 = vadd.f32 %v1319, %v1639
      %v1641 = vpop.f32.mrb[0].mxu0
      %1642 = vmatprep.mubr.f32.mxu0 %v1431
      %1643 = vmatmul.mubr.f32.gmra.mrb[0].mxu0 %v468
      %v1644 = vpop.f32.mrb[0].mxu0
      %v1645 = vadd.f32 %v1324, %v1644
      %v1646 = vpop.f32.mrb[0].mxu0
      %1647 = vmatprep.mubr.f32.mxu0 %v1434
      %1648 = vmatmul.mubr.f32.gmra.mrb[0].mxu0 %v470
      %v1649 = vpop.f32.mrb[0].mxu0
      %v1650 = vadd.f32 %v1329, %v1649
      %v1651 = vpop.f32.mrb[0].mxu0
      %1652 = vmatprep.mubr.f32.mxu0 %v1437
      %1653 = vmatmul.mubr.f32.gmra.mrb[0].mxu0 %v472
      %v1654 = vpop.f32.mrb[0].mxu0
      %v1655 = vadd.f32 %v1334, %v1654
      %v1656 = vpop.f32.mrb[0].mxu0
      %1657 = vmatprep.mubr.f32.mxu0 %v1440
      %1658 = vmatmul.mubr.f32.gmra.mrb[0].mxu0 %v474
      %v1659 = vpop.f32.mrb[0].mxu0
      %v1660 = vadd.f32 %v1339, %v1659
      %v1661 = vpop.f32.mrb[0].mxu0
      %1662 = vmatprep.mubr.f32.mxu0 %v1443
      %1663 = vmatmul.mubr.f32.gmra.mrb[0].mxu0 %v476
      %v1664 = vpop.f32.mrb[0].mxu0
      %v1665 = vadd.f32 %v1344, %v1664
      %v1666 = vpop.f32.mrb[0].mxu0
      %1667 = vmatprep.mubr.f32.mxu0 %v1446
      %1668 = vmatmul.mubr.f32.gmra.mrb[0].mxu0 %v478
      %v1669 = vpop.f32.mrb[0].mxu0
      %v1670 = vadd.f32 %v1349, %v1669
      %v1671 = vpop.f32.mrb[0].mxu0
      %1672 = vdwg.mxu0
      %vm1673 = vcmask 31744
      %1674 = vst.msk [vmem:[%s343] sm:$0xff] %vm1673, %v1515
      %1675 = vst.msk [vmem:[%s343 + $0x8] sm:$0xff] %vm1673, %v1520
      %1676 = vst.msk [vmem:[%s343 + $0x10] sm:$0xff] %vm1673, %v1525
      %1677 = vst.msk [vmem:[%s343 + $0x18] sm:$0xff] %vm1673, %v1530
      %1678 = vst.msk [vmem:[%s343 + $0x20] sm:$0xff] %vm1673, %v1535
      %1679 = vst.msk [vmem:[%s343 + $0x28] sm:$0xff] %vm1673, %v1540
      %1680 = vst.msk [vmem:[%s343 + $0x30] sm:$0xff] %vm1673, %v1545
      %1681 = vst.msk [vmem:[%s343 + $0x38] sm:$0xff] %vm1673, %v1550
      %1682 = vst.msk [vmem:[%s343 + $0x40] sm:$0xff] %vm1673, %v1555
      %1683 = vst.msk [vmem:[%s343 + $0x48] sm:$0xff] %vm1673, %v1560
      %1684 = vst.msk [vmem:[%s343 + $0x50] sm:$0xff] %vm1673, %v1565
      %1685 = vst.msk [vmem:[%s343 + $0x58] sm:$0xff] %vm1673, %v1570
      %1686 = vst.msk [vmem:[%s343 + $0x60] sm:$0xff] %vm1673, %v1575
      %1687 = vst.msk [vmem:[%s343 + $0x68] sm:$0xff] %vm1673, %v1580
      %1688 = vst.msk [vmem:[%s343 + $0x70] sm:$0xff] %vm1673, %v1585
      %1689 = vst.msk [vmem:[%s343 + $0x78] sm:$0xff] %vm1673, %v1590
      %1690 = vst.msk [vmem:[%s343 + $0x80] sm:$0xff] %vm1673, %v1595
      %1691 = vst.msk [vmem:[%s343 + $0x88] sm:$0xff] %vm1673, %v1600
      %1692 = vst.msk [vmem:[%s343 + $0x90] sm:$0xff] %vm1673, %v1605
      %1693 = vst.msk [vmem:[%s343 + $0x98] sm:$0xff] %vm1673, %v1610
      %1694 = vst.msk [vmem:[%s343 + $0xa0] sm:$0xff] %vm1673, %v1615
      %1695 = vst.msk [vmem:[%s343 + $0xa8] sm:$0xff] %vm1673, %v1620
      %1696 = vst.msk [vmem:[%s343 + $0xb0] sm:$0xff] %vm1673, %v1625
      %1697 = vst.msk [vmem:[%s343 + $0xb8] sm:$0xff] %vm1673, %v1630
      %1698 = vst.msk [vmem:[%s343 + $0xc0] sm:$0xff] %vm1673, %v1635
      %1699 = vst.msk [vmem:[%s343 + $0xc8] sm:$0xff] %vm1673, %v1640
      %1700 = vst.msk [vmem:[%s343 + $0xd0] sm:$0xff] %vm1673, %v1645
      %1701 = vst.msk [vmem:[%s343 + $0xd8] sm:$0xff] %vm1673, %v1650
      %1702 = vst.msk [vmem:[%s343 + $0xe0] sm:$0xff] %vm1673, %v1655
      %1703 = vst.msk [vmem:[%s343 + $0xe8] sm:$0xff] %vm1673, %v1660
      %1704 = vst.msk [vmem:[%s343 + $0xf0] sm:$0xff] %vm1673, %v1665
      %1705 = vst.msk [vmem:[%s343 + $0xf8] sm:$0xff] %vm1673, %v1670
      %p1706 = scmp.lt.s32.totalorder %s22, 1
      %s1707 = scalar_select %p1706, %s22, 1
      %p1708 = scmp.lt.s32.totalorder %s23, 0
      %s1709 = scalar_select %p1708, %s23, 0
      %s1710 = smul.addr %s1707, 32
      %s1711 = sadd.s32 %s1709, %s1710
      %s1712 = smul.addr %s1711, 8
      %s1713 = scalar_lea.vmem %s7, %s1712
      // Predicated region
      $region49: #{tpu_custom_call.1} parent=47 // pred_check
        %p1714 = pneg %p214
      $region50: #{tpu_custom_call.1} parent=47 // pred_check_branch
        %1716 = sbr.rel (%p1714) target = $region52
      $region51: #{tpu_custom_call.1} parent=47 // pred_region
        _
      $region52: #{tpu_custom_call.1} parent=47 // pred_fallthru
        _
    $region48: #{tpu_custom_call.1} parent=5 // pred_fallthru
      _
    %p1717 = scmp.le.s32.totalorder 2, %s13
    // Predicated region
    $region53: #{tpu_custom_call.1} parent=5 // pred_check
      %p1718 = pneg %p1717
    $region54: #{tpu_custom_call.1} parent=5 // pred_check_branch
      %1720 = sbr.rel (%p1718) target = $region56
    $region55: #{tpu_custom_call.1} parent=5 // pred_region
      %s1721 = ssub.s32 %s13, 2
      // Predicated region
      $region57: #{tpu_custom_call.1} parent=55 // pred_check
        %p1722 = pneg %p220
      $region58: #{tpu_custom_call.1} parent=55 // pred_check_branch
        %1724 = sbr.rel (%p1722) target = $region60
      $region59: #{tpu_custom_call.1} parent=55 // pred_region
        %p1725 = scmp.lt.s32.totalorder %s24, 1
        %s1726 = scalar_select %p1725, %s24, 1
        %p1727 = scmp.lt.s32.totalorder %s25, 0
        %s1728 = scalar_select %p1727, %s25, 0
        %s1729 = smul.addr %s1726, 32
        %s1730 = sadd.s32 %s1728, %s1729
        %s1731 = smul.addr %s1730, 8
        %s1732 = scalar_lea.vmem %s7, %s1731
      $region60: #{tpu_custom_call.1} parent=55 // pred_fallthru
        _
    $region56: #{tpu_custom_call.1} parent=5 // pred_fallthru
      _
  $region6: #{tpu_custom_call.1} parent=0 // loop_footer
    %s17 = sadd.s32 1, %s13
  $region7: #{tpu_custom_call.1} parent=0 // loop_footer_branch
    %12 = sbr.rel target = $region3
  $region8: #{tpu_custom_call.1} parent=0 // loop_exit
    _

</llo_original>
